<compile_context>
chip_gen: v5e
topology: v5e:2x2
jax: 0.10.0
libtpu: 0.0.40
codegen_flags: <defaults>
</compile_context>

<pallas_src>
import functools

import jax
import jax.numpy as jnp
from jax.experimental import pallas as pl
from jax.experimental.pallas import tpu as pltpu


# ----------------------------------------------------------------------------
# small helpers
# ----------------------------------------------------------------------------
def _round_up(x, m):
    return ((x + m - 1) // m) * m


def _pad_last(a, target):
    pad = target - a.shape[-1]
    if pad == 0:
        return a
    cfg = [(0, 0)] * (a.ndim - 1) + [(0, pad)]
    return jnp.pad(a, cfg)


def _pad_dim(a, axis, target):
    pad = target - a.shape[axis]
    if pad == 0:
        return a
    cfg = [(0, 0)] * a.ndim
    cfg[axis] = (0, pad)
    return jnp.pad(a, cfg)


def _bytes(shape, dtype):
    n = 1
    for s in shape:
        n *= int(s)
    return n * jnp.dtype(dtype).itemsize


# ----------------------------------------------------------------------------
# kernel bodies
# ----------------------------------------------------------------------------
def _epilogue(accg, accs, wp_ref, bp_ref, lvl_ref, wrg_ref, wrs_ref, wrl_ref,
              br_ref, predg_ref, preds_ref, status_ref):
    """pred head + Status_classifier on the accumulated representations."""
    wp = wp_ref[...]
    bp = bp_ref[...]
    predg_ref[...] = (jnp.dot(accg, wp, preferred_element_type=jnp.float32)
                      + bp).astype(predg_ref.dtype)
    preds_ref[...] = (jnp.dot(accs, wp, preferred_element_type=jnp.float32)
                      + bp).astype(preds_ref.dtype)
    # regress_layer(cat([growth_repr, season_repr, level_regress(level)], -1))
    # with the weight pre-split into the growth / season / level chunks.
    status = (jnp.dot(accg, wrg_ref[...], preferred_element_type=jnp.float32)
              + jnp.dot(accs, wrs_ref[...], preferred_element_type=jnp.float32)
              + jnp.dot(lvl_ref[...], wrl_ref[...],
                        preferred_element_type=jnp.float32)
              + br_ref[...])
    status_ref[...] = status.astype(status_ref.dtype)


def _decoder_status_kernel(
    gro_ref,      # (1, TM, d)     bf16 growth horizon, this layer / row tile
    sea_ref,      # (1, TM, d)     bf16 season horizon
    sg_ref,       # (TM, d)        bf16 status-growth horizon (layer-invariant)
    ss_ref,       # (TM, d)        bf16 status-season horizon
    wft_ref,      # (1, d, d_pad)  bf16 fuse weight, "status" half of concat
    wfb_ref,      # (1, d, d_pad)  bf16 fuse weight, "horizon" half
    bf_ref,       # (1, 1, d_pad)  f32  fuse bias
    wp_ref,       # (d_pad, c_pad) f32  pred weight (padded rows/cols)
    bp_ref,       # (1, c_pad)     f32
    lvl_ref,      # (TM, level_num) f32 level_regress rows (built in wrapper)
    wrg_ref,      # (d_pad, s_pad) f32  regress weight, growth channels
    wrs_ref,      # (d_pad, s_pad) f32  regress weight, season channels
    wrl_ref,      # (level_num, s_pad) f32 regress weight, level channels
    br_ref,       # (1, s_pad)     f32
    damp_ref,     # OUT (1, TM, d_pad)  per-layer growth damping
    predg_ref,    # OUT (TM, c_pad)     pred(growth_repr)
    preds_ref,    # OUT (TM, c_pad)     pred(season_repr)
    status_ref,   # OUT (TM, s_pad)
    accg_ref,     # SCRATCH (TM, d_pad) f32 growth_repr running sum
    accs_ref,     # SCRATCH (TM, d_pad) f32 season_repr running sum
):
    l = pl.program_id(1)

    @pl.when(l == 0)
    def _():
        accg_ref[...] = jnp.zeros_like(accg_ref)
        accs_ref[...] = jnp.zeros_like(accs_ref)

    wft = wft_ref[0]
    wfb = wfb_ref[0]
    bias = bf_ref[0]

    # fuse_layer: Conv1d(k=1)(cat([status, horizon], ch)) on channels-last ==
    #   status @ W[:d] + horizon @ W[d:] + b   (no concat materialized;
    #   weight columns zero-padded to d_pad so the result is lane-dense).
    fused_g = (jnp.dot(sg_ref[...], wft, preferred_element_type=jnp.float32)
               + jnp.dot(gro_ref[0], wfb, preferred_element_type=jnp.float32)
               + bias)                                        # (TM, d_pad) f32
    fused_s = (jnp.dot(ss_ref[...], wft, preferred_element_type=jnp.float32)
               + jnp.dot(sea_ref[0], wfb, preferred_element_type=jnp.float32)
               + bias)

    accg_ref[...] += fused_g
    accs_ref[...] += fused_s

    # growth_damping fuse is byte-identical to the growth-horizon fuse under
    # the placeholder horizon layers -> reuse, don't recompute.
    damp_ref[0] = fused_g.astype(damp_ref.dtype)

    @pl.when(l == pl.num_programs(1) - 1)
    def _():
        _epilogue(accg_ref[...], accs_ref[...], wp_ref, bp_ref, lvl_ref,
                  wrg_ref, wrs_ref, wrl_ref, br_ref,
                  predg_ref, preds_ref, status_ref)


def _decoder_plain_kernel(
    gro_ref, sea_ref,
    wp_ref, bp_ref, lvl_ref, wrg_ref, wrs_ref, wrl_ref, br_ref,
    damp_ref, predg_ref, preds_ref, status_ref,
    accg_ref, accs_ref,
):
    """status_*_emb is None path: no fuse -> no per-layer matmul at all."""
    l = pl.program_id(1)

    @pl.when(l == 0)
    def _():
        accg_ref[...] = jnp.zeros_like(accg_ref)
        accs_ref[...] = jnp.zeros_like(accs_ref)

    g = gro_ref[0]
    accg_ref[...] += g.astype(jnp.float32)
    accs_ref[...] += sea_ref[0].astype(jnp.float32)
    damp_ref[0] = g.astype(damp_ref.dtype)

    @pl.when(l == pl.num_programs(1) - 1)
    def _():
        _epilogue(accg_ref[...], accs_ref[...], wp_ref, bp_ref, lvl_ref,
                  wrg_ref, wrs_ref, wrl_ref, br_ref,
                  predg_ref, preds_ref, status_ref)


# ----------------------------------------------------------------------------
# parameter init (deterministic, PyTorch-Linear-style uniform bounds)
# ----------------------------------------------------------------------------
def _uniform(key, shape, bound):
    return jax.random.uniform(key, shape, jnp.float32, -bound, bound)


def init_decoder_params(key, num_layers, d_model, c_out, pred_len,
                        level_num, status_num):
    ks = jax.random.split(key, 8)
    inv = lambda n: 1.0 / (n ** 0.5)
    din = 2 * d_model + level_num
    return {
        # self.pred = nn.Linear(d_model, c_out)      (stored as (in, out))
        "pred_w": _uniform(ks[0], (d_model, c_out), inv(d_model)),
        "pred_b": _uniform(ks[1], (c_out,), inv(d_model)),
        # Status_classifier.level_regress = nn.Linear(1, pred_len)
        "level_w": _uniform(ks[2], (pred_len,), 1.0),
        "level_b": _uniform(ks[3], (pred_len,), 1.0),
        # Status_classifier.regress_layer = nn.Linear(2*d_model+level_num, status_num)
        "regress_w": _uniform(ks[4], (din, status_num), inv(din)),
        "regress_b": _uniform(ks[5], (status_num,), inv(din)),
        # fuse_layer[i] = Conv1d(2*d_model -> d_model, k=1), stored
        # channels-last as (L, 2*d_model, d_model).  (Real checkpoints:
        # transpose torch (out, in, 1) -> (in, out).)
        "fuse_w": _uniform(ks[6], (num_layers, 2 * d_model, d_model),
                           inv(2 * d_model)),
        "fuse_b": _uniform(ks[7], (num_layers, d_model), inv(2 * d_model)),
    }


# ----------------------------------------------------------------------------
# Decoder forward (single fused pallas_call)
# ----------------------------------------------------------------------------
def decoder_forward(params, growths, seasons, level,
                    status_growths_emb, status_seasons_emb, *,
                    pred_len, block_rows=None, stream_dtype=jnp.bfloat16):
    B, _, d_model = growths[0].shape
    num_layers = len(growths)
    M = B * pred_len
    out_dtype = growths[0].dtype

    c_out = params["pred_w"].shape[1]
    level_num = level.shape[2]
    status_num = params["regress_b"].shape[0]

    # Mirror the torch condition (it checks status_seasons_emb twice, then
    # dereferences status_growths_emb).
    has_status = status_seasons_emb is not None

    def horizon(x, dt):
        # TODO(synk): the real DecoderLayer / statusLayer modules are
        # constructor arguments whose source is not part of the spec; modeled
        # as "take the last pred_len steps" horizon layers (preserves every
        # downstream shape / contraction).
        return x[:, -pred_len:, :].reshape(M, d_model).astype(dt)

    # lane-dense padded sizes (weight columns / output last dims only)
    c_pad = _round_up(c_out, 128)
    s_pad = _round_up(status_num, 128)
    d_pad = _round_up(d_model, 128) if has_status else d_model

    # streamed per-layer operands (bf16 when the MXU fuse path is active;
    # pass stream_dtype=jnp.float32 for exact PyTorch-f32 numerics)
    h_dtype = stream_dtype if has_status else out_dtype
    gro = jnp.stack([horizon(g, h_dtype) for g in growths])     # (L, M, d)
    sea = jnp.stack([horizon(s, h_dtype) for s in seasons])     # (L, M, d)

    # epilogue weights, f32, zero-padded to lane-dense columns
    wp = _pad_last(_pad_dim(params["pred_w"], 0, d_pad), c_pad)        # (d_pad, c_pad)
    bp = _pad_last(params["pred_b"], c_pad).reshape(1, c_pad)
    wrg = _pad_last(_pad_dim(params["regress_w"][:d_model], 0, d_pad), s_pad)
    wrs = _pad_last(_pad_dim(params["regress_w"][d_model:2 * d_model], 0, d_pad), s_pad)
    wrl = _pad_last(params["regress_w"][2 * d_model:], s_pad)          # (level_num, s_pad)
    br = _pad_last(params["regress_b"], s_pad).reshape(1, s_pad)

    # level_regress = Linear(1, pred_len): K=1 -> folded into the wrapper
    # (fuses into XLA for free, removes two (M,1) kernel operands).
    lvl = level[:, 0, :]                                               # (B, level_num)
    l_rows = (lvl[:, None, :] * params["level_w"][None, :, None]
              + params["level_b"][None, :, None])                      # (B, P, level_num)
    l_rows = l_rows.reshape(M, level_num).astype(jnp.float32)

    # grid / tiling: rows "parallel" (megacore on v7x), layers "arbitrary"
    tm = M if block_rows is None else min(block_rows, M)
    assert M % tm == 0, "block_rows must divide B*pred_len"
    grid = (M // tm, num_layers)

    row_layer = lambda shp: pl.BlockSpec(shp, lambda r, l: (l, r, 0))
    per_row = lambda shp: pl.BlockSpec(shp, lambda r, l: (r, 0))
    per_layer = lambda shp: pl.BlockSpec(shp, lambda r, l: (l, 0, 0))
    const = lambda shp: pl.BlockSpec(shp, lambda r, l: (0, 0))

    epi_inputs = (wp, bp, l_rows, wrg, wrs, wrl, br)
    epi_specs = [const((d_pad, c_pad)), const((1, c_pad)),
                 per_row((tm, level_num)),
                 const((d_pad, s_pad)), const((d_pad, s_pad)),
                 const((level_num, s_pad)), const((1, s_pad))]

    if has_status:
        sg = horizon(status_growths_emb, stream_dtype)                 # (M, d)
        ss = horizon(status_seasons_emb, stream_dtype)
        # pre-split fuse weight into [status ; horizon] halves of the channel
        # concat; zero-pad output columns so the fused result is lane-dense.
        wft = _pad_last(params["fuse_w"][:, :d_model, :], d_pad).astype(stream_dtype)
        wfb = _pad_last(params["fuse_w"][:, d_model:, :], d_pad).astype(stream_dtype)
        bf = _pad_last(params["fuse_b"], d_pad).reshape(num_layers, 1, d_pad)
        bf = bf.astype(jnp.float32)

        kernel = _decoder_status_kernel
        inputs = (gro, sea, sg, ss, wft, wfb, bf) + epi_inputs
        in_specs = [row_layer((1, tm, d_model)), row_layer((1, tm, d_model)),
                    per_row((tm, d_model)), per_row((tm, d_model)),
                    per_layer((1, d_model, d_pad)),
                    per_layer((1, d_model, d_pad)),
                    per_layer((1, 1, d_pad))] + epi_specs
    else:
        kernel = _decoder_plain_kernel
        inputs = (gro, sea) + epi_inputs
        in_specs = [row_layer((1, tm, d_model)),
                    row_layer((1, tm, d_model))] + epi_specs

    out_shape = (
        jax.ShapeDtypeStruct((num_layers, M, d_pad), out_dtype),   # damp
        jax.ShapeDtypeStruct((M, c_pad), out_dtype),               # pred(growth)
        jax.ShapeDtypeStruct((M, c_pad), out_dtype),               # pred(season)
        jax.ShapeDtypeStruct((M, s_pad), out_dtype),               # status
    )
    out_specs = (
        pl.BlockSpec((1, tm, d_pad), lambda r, l: (l, r, 0)),
        per_row((tm, c_pad)),
        per_row((tm, c_pad)),
        per_row((tm, s_pad)),
    )
    scratch_shapes = [pltpu.VMEM((tm, d_pad), jnp.float32),
                      pltpu.VMEM((tm, d_pad), jnp.float32)]

    # vmem limit sized from the actual blocks (x2 double-buffer, x2 margin)
    est = sum(2 * _bytes(s.block_shape, x.dtype) for s, x in zip(in_specs, inputs))
    est += sum(2 * _bytes(s.block_shape, o.dtype) for s, o in zip(out_specs, out_shape))
    est += 2 * _bytes((tm, d_pad), jnp.float32)
    vmem_limit = int(min(max(2 * est, 16 << 20), 64 << 20))

    damp, pred_g, pred_s, status = pl.pallas_call(
        kernel,
        out_shape=out_shape,
        grid_spec=pltpu.PrefetchScalarGridSpec(
            num_scalar_prefetch=0,
            grid=grid,
            in_specs=in_specs,
            out_specs=out_specs,
            scratch_shapes=scratch_shapes),
        compiler_params=pltpu.CompilerParams(
            dimension_semantics=("parallel", "arbitrary"),
            vmem_limit_bytes=vmem_limit),
    )(*inputs)

    pred_growth = pred_g[:, :c_out].reshape(B, pred_len, c_out)
    pred_season = pred_s[:, :c_out].reshape(B, pred_len, c_out)
    growth_dampings = [damp[i, :, :d_model].reshape(B, pred_len, d_model)
                       for i in range(num_layers)]
    status_out = status[:, :status_num].reshape(B, pred_len, status_num)
    return pred_growth, pred_season, growth_dampings, status_out


# ----------------------------------------------------------------------------
if __name__ == "__main__":
    B, seq_len, d_model, c_out, pred_len = 2, 16, 32, 4, 8
    num_layers = 2
    status = [3] * 23                 # default `status` list
    level_num = len(status)           # 23
    status_num = sum(status)          # 69

    key = jax.random.PRNGKey(0)
    kp, kd = jax.random.split(key)
    params = init_decoder_params(kp, num_layers, d_model, c_out, pred_len,
                                 level_num, status_num)

    dkeys = jax.random.split(kd, 2 * num_layers + 3)
    growths = [jax.random.normal(dkeys[i], (B, seq_len, d_model), jnp.float32)
               for i in range(num_layers)]
    seasons = [jax.random.normal(dkeys[num_layers + i], (B, seq_len, d_model),
                                 jnp.float32) for i in range(num_layers)]
    level = jax.random.normal(dkeys[-3], (B, 1, level_num), jnp.float32)
    sg_emb = jax.random.normal(dkeys[-2], (B, seq_len, d_model), jnp.float32)
    ss_emb = jax.random.normal(dkeys[-1], (B, seq_len, d_model), jnp.float32)

    fwd = jax.jit(functools.partial(decoder_forward, pred_len=pred_len))

    # Path with statusLayer fusion (bf16-streamed fuse matmuls).
    pred_g, pred_s, dampings, status_out = fwd(
        params, growths, seasons, level, sg_emb, ss_emb)
    jax.block_until_ready((pred_g, pred_s, dampings, status_out))
    assert pred_g.shape == (B, pred_len, c_out)
    assert pred_s.shape == (B, pred_len, c_out)
    assert len(dampings) == num_layers
    assert dampings[0].shape == (B, pred_len, d_model)
    assert status_out.shape == (B, pred_len, status_num)

    # Path without status embeddings (fuse layers skipped entirely).
    outs2 = fwd(params, growths, seasons, level, None, None)
    jax.block_until_ready(outs2)
    assert outs2[0].shape == (B, pred_len, c_out)
    assert outs2[2][0].shape == (B, pred_len, d_model)
    assert outs2[3].shape == (B, pred_len, status_num)

    print("KERNEL_OK")
</pallas_src>

<mosaic_0001>
module attributes {stable_mosaic.version = 11 : i64} {
  func.func @_decoder_status_kernel(%arg0: i32, %arg1: i32, %arg2: memref<1x16x32xbf16, #tpu.memory_space<vmem>>, %arg3: memref<1x16x32xbf16, #tpu.memory_space<vmem>>, %arg4: memref<16x32xbf16, #tpu.memory_space<vmem>>, %arg5: memref<16x32xbf16, #tpu.memory_space<vmem>>, %arg6: memref<1x32x128xbf16, #tpu.memory_space<vmem>>, %arg7: memref<1x32x128xbf16, #tpu.memory_space<vmem>>, %arg8: memref<1x1x128xf32, #tpu.memory_space<vmem>>, %arg9: memref<128x128xf32, #tpu.memory_space<vmem>>, %arg10: memref<1x128xf32, #tpu.memory_space<vmem>>, %arg11: memref<16x23xf32, #tpu.memory_space<vmem>>, %arg12: memref<128x128xf32, #tpu.memory_space<vmem>>, %arg13: memref<128x128xf32, #tpu.memory_space<vmem>>, %arg14: memref<23x128xf32, #tpu.memory_space<vmem>>, %arg15: memref<1x128xf32, #tpu.memory_space<vmem>>, %arg16: memref<1x16x128xf32, #tpu.memory_space<vmem>>, %arg17: memref<16x128xf32, #tpu.memory_space<vmem>>, %arg18: memref<16x128xf32, #tpu.memory_space<vmem>>, %arg19: memref<16x128xf32, #tpu.memory_space<vmem>>, %arg20: memref<16x128xf32, #tpu.memory_space<vmem>>, %arg21: memref<16x128xf32, #tpu.memory_space<vmem>>) attributes {dimension_semantics = [#tpu.dimension_semantics<parallel>, #tpu.dimension_semantics<arbitrary>], iteration_bounds = array<i64: 1, 2>, scalar_prefetch = 0 : i64, scratch_operands = 2 : i64, tpu.core_type = #tpu.core_type<tc>, window_params = [{transform_indices = @transform_0, window_bounds = array<i64: 1, 16, 32>}, {transform_indices = @transform_1, window_bounds = array<i64: 1, 16, 32>}, {transform_indices = @transform_2, window_bounds = array<i64: 16, 32>}, {transform_indices = @transform_3, window_bounds = array<i64: 16, 32>}, {transform_indices = @transform_4, window_bounds = array<i64: 1, 32, 128>}, {transform_indices = @transform_5, window_bounds = array<i64: 1, 32, 128>}, {transform_indices = @transform_6, window_bounds = array<i64: 1, 1, 128>}, {pipeline_mode = #tpu.pipeline_mode<synchronous>, transform_indices = @transform_7, window_bounds = array<i64: 128, 128>}, {pipeline_mode = #tpu.pipeline_mode<synchronous>, transform_indices = @transform_8, window_bounds = array<i64: 1, 128>}, {transform_indices = @transform_9, window_bounds = array<i64: 16, 23>}, {pipeline_mode = #tpu.pipeline_mode<synchronous>, transform_indices = @transform_10, window_bounds = array<i64: 128, 128>}, {pipeline_mode = #tpu.pipeline_mode<synchronous>, transform_indices = @transform_11, window_bounds = array<i64: 128, 128>}, {pipeline_mode = #tpu.pipeline_mode<synchronous>, transform_indices = @transform_12, window_bounds = array<i64: 23, 128>}, {pipeline_mode = #tpu.pipeline_mode<synchronous>, transform_indices = @transform_13, window_bounds = array<i64: 1, 128>}, {transform_indices = @transform_14, window_bounds = array<i64: 1, 16, 128>}, {transform_indices = @transform_15, window_bounds = array<i64: 16, 128>}, {transform_indices = @transform_16, window_bounds = array<i64: 16, 128>}, {transform_indices = @transform_17, window_bounds = array<i64: 16, 128>}]} {
    %c0_i32 = arith.constant 0 : i32
    %0 = arith.cmpi eq, %arg1, %c0_i32 : i32
    %1 = arith.extui %0 : i1 to i32
    %c0_i32_0 = arith.constant 0 : i32
    %2 = arith.cmpi ne, %1, %c0_i32_0 : i32
    scf.if %2 {
      %cst_34 = arith.constant 0.000000e+00 : f32
      %37 = vector.broadcast %cst_34 : f32 to vector<16x128xf32>
      %c0_35 = arith.constant 0 : index
      %c0_36 = arith.constant 0 : index
      %38 = vector.load %arg20[%c0_35, %c0_36] : memref<16x128xf32, #tpu.memory_space<vmem>>, vector<16x128xf32>
      tpu.vector_store %arg20[%c0_35, %c0_36], %37 {strides = array<i32>} : memref<16x128xf32, #tpu.memory_space<vmem>>, vector<16x128xf32>,
      %cst_37 = arith.constant 0.000000e+00 : f32
      %39 = vector.broadcast %cst_37 : f32 to vector<16x128xf32>
      %c0_38 = arith.constant 0 : index
      %c0_39 = arith.constant 0 : index
      %40 = vector.load %arg21[%c0_38, %c0_39] : memref<16x128xf32, #tpu.memory_space<vmem>>, vector<16x128xf32>
      tpu.vector_store %arg21[%c0_38, %c0_39], %39 {strides = array<i32>} : memref<16x128xf32, #tpu.memory_space<vmem>>, vector<16x128xf32>,
    } else {
    }
    %c0 = arith.constant 0 : index
    %c0_1 = arith.constant 0 : index
    %c0_2 = arith.constant 0 : index
    %3 = vector.load %arg6[%c0, %c0_1, %c0_2] : memref<1x32x128xbf16, #tpu.memory_space<vmem>>, vector<1x32x128xbf16>
    %4 = vector.shape_cast %3 : vector<1x32x128xbf16> to vector<32x128xbf16>
    %c0_3 = arith.constant 0 : index
    %c0_4 = arith.constant 0 : index
    %c0_5 = arith.constant 0 : index
    %5 = vector.load %arg7[%c0_3, %c0_4, %c0_5] : memref<1x32x128xbf16, #tpu.memory_space<vmem>>, vector<1x32x128xbf16>
    %6 = vector.shape_cast %5 : vector<1x32x128xbf16> to vector<32x128xbf16>
    %c0_6 = arith.constant 0 : index
    %c0_7 = arith.constant 0 : index
    %c0_8 = arith.constant 0 : index
    %7 = vector.load %arg8[%c0_6, %c0_7, %c0_8] : memref<1x1x128xf32, #tpu.memory_space<vmem>>, vector<1x1x128xf32>
    %8 = vector.shape_cast %7 : vector<1x1x128xf32> to vector<1x128xf32>
    %c0_9 = arith.constant 0 : index
    %c0_10 = arith.constant 0 : index
    %9 = vector.load %arg4[%c0_9, %c0_10] : memref<16x32xbf16, #tpu.memory_space<vmem>>, vector<16x32xbf16>
    %cst = arith.constant dense<0.000000e+00> : vector<16x128xf32>
    %10 = tpu.matmul %9, %4, %cst {dimension_numbers = #tpu.dot_dimension_numbers<[1], [0], [0], [1], [0, 0, 1, 1], [], []>} : vector<16x32xbf16>, vector<32x128xbf16>, vector<16x128xf32> -> vector<16x128xf32>
    %c0_11 = arith.constant 0 : index
    %c0_12 = arith.constant 0 : index
    %c0_13 = arith.constant 0 : index
    %11 = vector.load %arg2[%c0_11, %c0_12, %c0_13] : memref<1x16x32xbf16, #tpu.memory_space<vmem>>, vector<1x16x32xbf16>
    %12 = vector.shape_cast %11 : vector<1x16x32xbf16> to vector<16x32xbf16>
    %cst_14 = arith.constant dense<0.000000e+00> : vector<16x128xf32>
    %13 = tpu.matmul %12, %6, %cst_14 {dimension_numbers = #tpu.dot_dimension_numbers<[1], [0], [0], [1], [0, 0, 1, 1], [], []>} : vector<16x32xbf16>, vector<32x128xbf16>, vector<16x128xf32> -> vector<16x128xf32>
    %14 = arith.addf %10, %13 : vector<16x128xf32>
    %15 = vector.broadcast %8 : vector<1x128xf32> to vector<16x128xf32>
    %16 = arith.addf %14, %15 : vector<16x128xf32>
    %c0_15 = arith.constant 0 : index
    %c0_16 = arith.constant 0 : index
    %17 = vector.load %arg5[%c0_15, %c0_16] : memref<16x32xbf16, #tpu.memory_space<vmem>>, vector<16x32xbf16>
    %cst_17 = arith.constant dense<0.000000e+00> : vector<16x128xf32>
    %18 = tpu.matmul %17, %4, %cst_17 {dimension_numbers = #tpu.dot_dimension_numbers<[1], [0], [0], [1], [0, 0, 1, 1], [], []>} : vector<16x32xbf16>, vector<32x128xbf16>, vector<16x128xf32> -> vector<16x128xf32>
    %c0_18 = arith.constant 0 : index
    %c0_19 = arith.constant 0 : index
    %c0_20 = arith.constant 0 : index
    %19 = vector.load %arg3[%c0_18, %c0_19, %c0_20] : memref<1x16x32xbf16, #tpu.memory_space<vmem>>, vector<1x16x32xbf16>
    %20 = vector.shape_cast %19 : vector<1x16x32xbf16> to vector<16x32xbf16>
    %cst_21 = arith.constant dense<0.000000e+00> : vector<16x128xf32>
    %21 = tpu.matmul %20, %6, %cst_21 {dimension_numbers = #tpu.dot_dimension_numbers<[1], [0], [0], [1], [0, 0, 1, 1], [], []>} : vector<16x32xbf16>, vector<32x128xbf16>, vector<16x128xf32> -> vector<16x128xf32>
    %22 = arith.addf %18, %21 : vector<16x128xf32>
    %23 = vector.broadcast %8 : vector<1x128xf32> to vector<16x128xf32>
    %24 = arith.addf %22, %23 : vector<16x128xf32>
    %c0_22 = arith.constant 0 : index
    %c0_23 = arith.constant 0 : index
    %25 = vector.load %arg20[%c0_22, %c0_23] : memref<16x128xf32, #tpu.memory_space<vmem>>, vector<16x128xf32>
    %26 = arith.addf %25, %16 : vector<16x128xf32>
    %c0_24 = arith.constant 0 : index
    %c0_25 = arith.constant 0 : index
    %27 = vector.load %arg20[%c0_24, %c0_25] : memref<16x128xf32, #tpu.memory_space<vmem>>, vector<16x128xf32>
    tpu.vector_store %arg20[%c0_24, %c0_25], %26 {strides = array<i32>} : memref<16x128xf32, #tpu.memory_space<vmem>>, vector<16x128xf32>,
    %c0_26 = arith.constant 0 : index
    %c0_27 = arith.constant 0 : index
    %28 = vector.load %arg21[%c0_26, %c0_27] : memref<16x128xf32, #tpu.memory_space<vmem>>, vector<16x128xf32>
    %29 = arith.addf %28, %24 : vector<16x128xf32>
    %c0_28 = arith.constant 0 : index
    %c0_29 = arith.constant 0 : index
    %30 = vector.load %arg21[%c0_28, %c0_29] : memref<16x128xf32, #tpu.memory_space<vmem>>, vector<16x128xf32>
    tpu.vector_store %arg21[%c0_28, %c0_29], %29 {strides = array<i32>} : memref<16x128xf32, #tpu.memory_space<vmem>>, vector<16x128xf32>,
    %c0_30 = arith.constant 0 : index
    %c0_31 = arith.constant 0 : index
    %c0_32 = arith.constant 0 : index
    %31 = vector.load %arg16[%c0_30, %c0_31, %c0_32] : memref<1x16x128xf32, #tpu.memory_space<vmem>>, vector<1x16x128xf32>
    %32 = vector.shape_cast %31 : vector<1x16x128xf32> to vector<16x128xf32>
    %33 = vector.shape_cast %16 : vector<16x128xf32> to vector<1x16x128xf32>
    tpu.vector_store %arg16[%c0_30, %c0_31, %c0_32], %33 {strides = array<i32>} : memref<1x16x128xf32, #tpu.memory_space<vmem>>, vector<1x16x128xf32>,
    %c1_i32 = arith.constant 1 : i32
    %34 = arith.cmpi eq, %arg1, %c1_i32 : i32
    %35 = arith.extui %34 : i1 to i32
    %c0_i32_33 = arith.constant 0 : i32
    %36 = arith.cmpi ne, %35, %c0_i32_33 : i32
    scf.if %36 {
      %c0_34 = arith.constant 0 : index
      %c0_35 = arith.constant 0 : index
      %37 = vector.load %arg20[%c0_34, %c0_35] : memref<16x128xf32, #tpu.memory_space<vmem>>, vector<16x128xf32>
      %c0_36 = arith.constant 0 : index
      %c0_37 = arith.constant 0 : index
      %38 = vector.load %arg21[%c0_36, %c0_37] : memref<16x128xf32, #tpu.memory_space<vmem>>, vector<16x128xf32>
      %c0_38 = arith.constant 0 : index
      %c0_39 = arith.constant 0 : index
      %39 = vector.load %arg9[%c0_38, %c0_39] : memref<128x128xf32, #tpu.memory_space<vmem>>, vector<128x128xf32>
      %c0_40 = arith.constant 0 : index
      %c0_41 = arith.constant 0 : index
      %40 = vector.load %arg10[%c0_40, %c0_41] : memref<1x128xf32, #tpu.memory_space<vmem>>, vector<1x128xf32>
      %cst_42 = arith.constant dense<0.000000e+00> : vector<16x128xf32>
      %41 = tpu.matmul %37, %39, %cst_42 {dimension_numbers = #tpu.dot_dimension_numbers<[1], [0], [0], [1], [0, 0, 1, 1], [], []>} : vector<16x128xf32>, vector<128x128xf32>, vector<16x128xf32> -> vector<16x128xf32>
      %42 = vector.broadcast %40 : vector<1x128xf32> to vector<16x128xf32>
      %43 = arith.addf %41, %42 : vector<16x128xf32>
      %c0_43 = arith.constant 0 : index
      %c0_44 = arith.constant 0 : index
      %44 = vector.load %arg17[%c0_43, %c0_44] : memref<16x128xf32, #tpu.memory_space<vmem>>, vector<16x128xf32>
      tpu.vector_store %arg17[%c0_43, %c0_44], %43 {strides = array<i32>} : memref<16x128xf32, #tpu.memory_space<vmem>>, vector<16x128xf32>,
      %cst_45 = arith.constant dense<0.000000e+00> : vector<16x128xf32>
      %45 = tpu.matmul %38, %39, %cst_45 {dimension_numbers = #tpu.dot_dimension_numbers<[1], [0], [0], [1], [0, 0, 1, 1], [], []>} : vector<16x128xf32>, vector<128x128xf32>, vector<16x128xf32> -> vector<16x128xf32>
      %46 = vector.broadcast %40 : vector<1x128xf32> to vector<16x128xf32>
      %47 = arith.addf %45, %46 : vector<16x128xf32>
      %c0_46 = arith.constant 0 : index
      %c0_47 = arith.constant 0 : index
      %48 = vector.load %arg18[%c0_46, %c0_47] : memref<16x128xf32, #tpu.memory_space<vmem>>, vector<16x128xf32>
      tpu.vector_store %arg18[%c0_46, %c0_47], %47 {strides = array<i32>} : memref<16x128xf32, #tpu.memory_space<vmem>>, vector<16x128xf32>,
      %c0_48 = arith.constant 0 : index
      %c0_49 = arith.constant 0 : index
      %49 = vector.load %arg12[%c0_48, %c0_49] : memref<128x128xf32, #tpu.memory_space<vmem>>, vector<128x128xf32>
      %cst_50 = arith.constant dense<0.000000e+00> : vector<16x128xf32>
      %50 = tpu.matmul %37, %49, %cst_50 {dimension_numbers = #tpu.dot_dimension_numbers<[1], [0], [0], [1], [0, 0, 1, 1], [], []>} : vector<16x128xf32>, vector<128x128xf32>, vector<16x128xf32> -> vector<16x128xf32>
      %c0_51 = arith.constant 0 : index
      %c0_52 = arith.constant 0 : index
      %51 = vector.load %arg13[%c0_51, %c0_52] : memref<128x128xf32, #tpu.memory_space<vmem>>, vector<128x128xf32>
      %cst_53 = arith.constant dense<0.000000e+00> : vector<16x128xf32>
      %52 = tpu.matmul %38, %51, %cst_53 {dimension_numbers = #tpu.dot_dimension_numbers<[1], [0], [0], [1], [0, 0, 1, 1], [], []>} : vector<16x128xf32>, vector<128x128xf32>, vector<16x128xf32> -> vector<16x128xf32>
      %53 = arith.addf %50, %52 : vector<16x128xf32>
      %c0_54 = arith.constant 0 : index
      %c0_55 = arith.constant 0 : index
      %54 = vector.load %arg11[%c0_54, %c0_55] : memref<16x23xf32, #tpu.memory_space<vmem>>, vector<16x23xf32>
      %c0_56 = arith.constant 0 : index
      %c0_57 = arith.constant 0 : index
      %55 = vector.load %arg14[%c0_56, %c0_57] : memref<23x128xf32, #tpu.memory_space<vmem>>, vector<23x128xf32>
      %cst_58 = arith.constant dense<0.000000e+00> : vector<16x128xf32>
      %56 = tpu.matmul %54, %55, %cst_58 {dimension_numbers = #tpu.dot_dimension_numbers<[1], [0], [0], [1], [0, 0, 1, 1], [], []>} : vector<16x23xf32>, vector<23x128xf32>, vector<16x128xf32> -> vector<16x128xf32>
      %57 = arith.addf %53, %56 : vector<16x128xf32>
      %c0_59 = arith.constant 0 : index
      %c0_60 = arith.constant 0 : index
      %58 = vector.load %arg15[%c0_59, %c0_60] : memref<1x128xf32, #tpu.memory_space<vmem>>, vector<1x128xf32>
      %59 = vector.broadcast %58 : vector<1x128xf32> to vector<16x128xf32>
      %60 = arith.addf %57, %59 : vector<16x128xf32>
      %c0_61 = arith.constant 0 : index
      %c0_62 = arith.constant 0 : index
      %61 = vector.load %arg19[%c0_61, %c0_62] : memref<16x128xf32, #tpu.memory_space<vmem>>, vector<16x128xf32>
      tpu.vector_store %arg19[%c0_61, %c0_62], %60 {strides = array<i32>} : memref<16x128xf32, #tpu.memory_space<vmem>>, vector<16x128xf32>,
    } else {
    }
    return
  }
  func.func @transform_0(%arg0: i32, %arg1: i32) -> (i32, i32, i32) {
    %c0_i32 = arith.constant 0 : i32
    %c0_i32_0 = arith.constant 0 : i32
    return %arg1, %arg0, %c0_i32 : i32, i32, i32
  }
  func.func @transform_1(%arg0: i32, %arg1: i32) -> (i32, i32, i32) {
    %c0_i32 = arith.constant 0 : i32
    %c0_i32_0 = arith.constant 0 : i32
    return %arg1, %arg0, %c0_i32 : i32, i32, i32
  }
  func.func @transform_2(%arg0: i32, %arg1: i32) -> (i32, i32) {
    %c0_i32 = arith.constant 0 : i32
    %c0_i32_0 = arith.constant 0 : i32
    return %arg0, %c0_i32 : i32, i32
  }
  func.func @transform_3(%arg0: i32, %arg1: i32) -> (i32, i32) {
    %c0_i32 = arith.constant 0 : i32
    %c0_i32_0 = arith.constant 0 : i32
    return %arg0, %c0_i32 : i32, i32
  }
  func.func @transform_4(%arg0: i32, %arg1: i32) -> (i32, i32, i32) {
    %c0_i32 = arith.constant 0 : i32
    %c0_i32_0 = arith.constant 0 : i32
    %c0_i32_1 = arith.constant 0 : i32
    return %arg1, %c0_i32, %c0_i32_0 : i32, i32, i32
  }
  func.func @transform_5(%arg0: i32, %arg1: i32) -> (i32, i32, i32) {
    %c0_i32 = arith.constant 0 : i32
    %c0_i32_0 = arith.constant 0 : i32
    %c0_i32_1 = arith.constant 0 : i32
    return %arg1, %c0_i32, %c0_i32_0 : i32, i32, i32
  }
  func.func @transform_6(%arg0: i32, %arg1: i32) -> (i32, i32, i32) {
    %c0_i32 = arith.constant 0 : i32
    %c0_i32_0 = arith.constant 0 : i32
    %c0_i32_1 = arith.constant 0 : i32
    return %arg1, %c0_i32, %c0_i32_0 : i32, i32, i32
  }
  func.func @transform_7(%arg0: i32, %arg1: i32) -> (i32, i32) {
    %c0_i32 = arith.constant 0 : i32
    %c0_i32_0 = arith.constant 0 : i32
    %c0_i32_1 = arith.constant 0 : i32
    return %c0_i32, %c0_i32_0 : i32, i32
  }
  func.func @transform_8(%arg0: i32, %arg1: i32) -> (i32, i32) {
    %c0_i32 = arith.constant 0 : i32
    %c0_i32_0 = arith.constant 0 : i32
    %c0_i32_1 = arith.constant 0 : i32
    return %c0_i32, %c0_i32_0 : i32, i32
  }
  func.func @transform_9(%arg0: i32, %arg1: i32) -> (i32, i32) {
    %c0_i32 = arith.constant 0 : i32
    %c0_i32_0 = arith.constant 0 : i32
    return %arg0, %c0_i32 : i32, i32
  }
  func.func @transform_10(%arg0: i32, %arg1: i32) -> (i32, i32) {
    %c0_i32 = arith.constant 0 : i32
    %c0_i32_0 = arith.constant 0 : i32
    %c0_i32_1 = arith.constant 0 : i32
    return %c0_i32, %c0_i32_0 : i32, i32
  }
  func.func @transform_11(%arg0: i32, %arg1: i32) -> (i32, i32) {
    %c0_i32 = arith.constant 0 : i32
    %c0_i32_0 = arith.constant 0 : i32
    %c0_i32_1 = arith.constant 0 : i32
    return %c0_i32, %c0_i32_0 : i32, i32
  }
  func.func @transform_12(%arg0: i32, %arg1: i32) -> (i32, i32) {
    %c0_i32 = arith.constant 0 : i32
    %c0_i32_0 = arith.constant 0 : i32
    %c0_i32_1 = arith.constant 0 : i32
    return %c0_i32, %c0_i32_0 : i32, i32
  }
  func.func @transform_13(%arg0: i32, %arg1: i32) -> (i32, i32) {
    %c0_i32 = arith.constant 0 : i32
    %c0_i32_0 = arith.constant 0 : i32
    %c0_i32_1 = arith.constant 0 : i32
    return %c0_i32, %c0_i32_0 : i32, i32
  }
  func.func @transform_14(%arg0: i32, %arg1: i32) -> (i32, i32, i32) {
    %c0_i32 = arith.constant 0 : i32
    %c0_i32_0 = arith.constant 0 : i32
    return %arg1, %arg0, %c0_i32 : i32, i32, i32
  }
  func.func @transform_15(%arg0: i32, %arg1: i32) -> (i32, i32) {
    %c0_i32 = arith.constant 0 : i32
    %c0_i32_0 = arith.constant 0 : i32
    return %arg0, %c0_i32 : i32, i32
  }
  func.func @transform_16(%arg0: i32, %arg1: i32) -> (i32, i32) {
    %c0_i32 = arith.constant 0 : i32
    %c0_i32_0 = arith.constant 0 : i32
    return %arg0, %c0_i32 : i32, i32
  }
  func.func @transform_17(%arg0: i32, %arg1: i32) -> (i32, i32) {
    %c0_i32 = arith.constant 0 : i32
    %c0_i32_0 = arith.constant 0 : i32
    return %arg0, %c0_i32 : i32, i32
  }
}

</mosaic_0001>

<llo_original>
// kernel: decoder_forward.1
$region0: #{decoder_forward.1}
  #allocation0 [shape = 'u32[]', space=smem, size = 0x4, offset = 0x4, fixed_abs, tag = 'smem constant byte address 0x4 - core index']
  #allocation1 [shape = 'u32[72,128]{1,0:T(1,128)}', space=vmem, size = 0x9000, scoped, tag = 'internal scratch']
  #allocation2 [shape = 'f32[16,128]{1,0:T(8,128)}', space=vmem, size = 0x2000, scoped, tag = 'scratch operand']
  #allocation3 [shape = 'f32[16,128]{1,0:T(8,128)}', space=vmem, size = 0x2000, scoped, tag = 'scratch operand']
  %s0 = inlined_call_operand.vmem [shape: bf16[2,16,32], index: 0, kind: input, shape index: {}]
  %s1 = inlined_call_operand.vmem [shape: bf16[2,16,32], index: 1, kind: input, shape index: {}]
  %s2 = inlined_call_operand.vmem [shape: bf16[16,32], index: 2, kind: input, shape index: {}]
  %s3 = inlined_call_operand.vmem [shape: bf16[16,32], index: 3, kind: input, shape index: {}]
  %s4 = inlined_call_operand.vmem [shape: bf16[2,32,128], index: 4, kind: input, shape index: {}]
  %s5 = inlined_call_operand.vmem [shape: bf16[2,32,128], index: 5, kind: input, shape index: {}]
  %s6 = inlined_call_operand.vmem [shape: f32[2,1,128], index: 6, kind: input, shape index: {}]
  %s7 = inlined_call_operand.vmem [shape: f32[128,128], index: 7, kind: input, shape index: {}]
  %s8 = inlined_call_operand.vmem [shape: f32[1,128], index: 8, kind: input, shape index: {}]
  %s9 = inlined_call_operand.vmem [shape: f32[16,23], index: 9, kind: input, shape index: {}]
  %s10 = inlined_call_operand.vmem [shape: f32[128,128], index: 10, kind: input, shape index: {}]
  %s11 = inlined_call_operand.vmem [shape: f32[128,128], index: 11, kind: input, shape index: {}]
  %s12 = inlined_call_operand.vmem [shape: f32[23,128], index: 12, kind: input, shape index: {}]
  %s13 = inlined_call_operand.vmem [shape: f32[1,128], index: 13, kind: input, shape index: {}]
  %s14 = inlined_call_operand.vmem [shape: f32[2,16,128], index: 14, kind: output, shape index: {0}]
  %s15 = inlined_call_operand.vmem [shape: f32[16,128], index: 15, kind: output, shape index: {1}]
  %s16 = inlined_call_operand.vmem [shape: f32[16,128], index: 16, kind: output, shape index: {2}]
  %s17 = inlined_call_operand.vmem [shape: f32[16,128], index: 17, kind: output, shape index: {3}]
  %18 = xla_tuple %s14, %s15, %s16, %s17
  %s19 = sld [smem:[#allocation0]]
  $region121: #{decoder_forward.1} parent=0
    _
  %s21 = ssub.s32 1, %s19
  %s22 = scalar_select 0, %s21, %s19
  loop: start=0, step=1, limit=4
  $region2: #{decoder_forward.1} parent=0 // loop_pre_header
    _
  $region3: #{decoder_forward.1} parent=0 // loop_header
    %s24 = sphi 0, %s28
    %p25 = scmp.ge.s32.totalorder %s24, 4
    %s31 = sphi 0, %s43
    %s32 = sphi 0, %s39
    %s33 = sphi 0, %s31
    %s34 = sphi 0, %s32
    %s35 = sphi 0, %s33
    %s36 = sphi 0, %s34
    %s48 = sphi 0, %s50
    %s51 = sphi 0, %s48
    %s52 = sphi 0, %s51
    %s68 = sphi 0, %s52
    %s76 = sphi 0, %s78
    %s79 = sphi 0, %s76
    %s80 = sphi 0, %s79
    %s96 = sphi 0, %s80
    %s102 = sphi 0, %s104
    %s105 = sphi 0, %s102
    %s106 = sphi 0, %s105
    %s122 = sphi 0, %s106
    %s128 = sphi 0, %s130
    %s131 = sphi 0, %s128
    %s132 = sphi 0, %s131
    %s148 = sphi 0, %s132
    %s154 = sphi 0, %s156
    %s157 = sphi 0, %s154
    %s158 = sphi 0, %s157
    %s174 = sphi 0, %s158
    %s180 = sphi 0, %s182
    %s183 = sphi 0, %s180
    %s184 = sphi 0, %s183
    %s200 = sphi 0, %s184
    %s206 = sphi 0, %s208
    %s209 = sphi 0, %s206
    %s210 = sphi 0, %s209
    %s226 = sphi 0, %s210
    %s230 = sphi 0, %s230
    %s232 = sphi 0, %s230
    %s233 = sphi 0, %s232
    %s247 = sphi 0, %s233
    %s251 = sphi 0, %s251
    %s253 = sphi 0, %s251
    %s254 = sphi 0, %s253
    %s268 = sphi 0, %s254
    %s274 = sphi 0, %s276
    %s277 = sphi 0, %s274
    %s278 = sphi 0, %s277
    %s294 = sphi 0, %s278
    %s298 = sphi 0, %s298
    %s300 = sphi 0, %s298
    %s301 = sphi 0, %s300
    %s315 = sphi 0, %s301
    %s319 = sphi 0, %s319
    %s321 = sphi 0, %s319
    %s322 = sphi 0, %s321
    %s336 = sphi 0, %s322
    %s340 = sphi 0, %s340
    %s342 = sphi 0, %s340
    %s343 = sphi 0, %s342
    %s357 = sphi 0, %s343
    %s361 = sphi 0, %s361
    %s363 = sphi 0, %s361
    %s364 = sphi 0, %s363
    %s378 = sphi 0, %s364
    %s386 = sphi 0, %s388
    %s389 = sphi 0, %s386
    %s390 = sphi 0, %s389
    %s406 = sphi 0, %s390
    %s412 = sphi 0, %s414
    %s415 = sphi 0, %s412
    %s416 = sphi 0, %s415
    %s432 = sphi 0, %s416
    %s438 = sphi 0, %s440
    %s441 = sphi 0, %s438
    %s442 = sphi 0, %s441
    %s458 = sphi 0, %s442
    %s464 = sphi 0, %s466
    %s467 = sphi 0, %s464
    %s468 = sphi 0, %s467
    %s484 = sphi 0, %s468
  $region4: #{decoder_forward.1} parent=0 // loop_header_branch
    %27 = sbr.rel (%p25) target = $region8
  $region5: #{decoder_forward.1} parent=0 // loop_body
    %s29 = ssub.s32 %s24, 1
    %s30 = ssub.s32 %s24, 2
    %s37 = sadd.s32 1, %s32
    %p38 = scmp.ge.s32.totalorder %s37, 2
    %s39 = scalar_select %p38, 0, %s37
    %s40 = sadd.s32 1, %s31
    %s41 = scalar_select %p38, %s40, %s31
    %p42 = scmp.ge.s32.totalorder %s41, 1
    %s43 = scalar_select %p42, 0, %s41
    %s44 = ssub.s32 %s32, %s39
    %s45 = ssub.s32 %s31, %s43
    %s46 = sor.u32 %s44, %s45
    %p47 = scmp.eq.s32.totalorder %s46, 0
    %s49 = sadd.s32 %s48, 1
    %s50 = scalar_select %p47, %s48, %s49
    %p53 = pneg %p47
    %p54 = scmp.eq.s32.totalorder %s24, 1
    %p55 = por %p53, %p54
    %p56 = scmp.ne.s32.totalorder %s48, %s51
    %p57 = scmp.eq.s32.totalorder %s24, 0
    %p58 = por %p56, %p57
    %p59 = scmp.ne.s32.totalorder %s48, %s51
    %p60 = scmp.eq.s32.totalorder %s29, 1
    %p61 = por %p59, %p60
    %p62 = scmp.ne.s32.totalorder %s51, %s52
    %p63 = scmp.eq.s32.totalorder %s29, 0
    %p64 = por %p62, %p63
    %p65 = scmp.ne.s32.totalorder %s51, %s52
    %p66 = scmp.eq.s32.totalorder %s30, 1
    %p67 = por %p65, %p66
    %p69 = scmp.ne.s32.totalorder %s52, %s68
    %p70 = scmp.eq.s32.totalorder %s30, 0
    %p71 = por %p69, %p70
    %s72 = ssub.s32 %s32, %s39
    %s73 = ssub.s32 %s31, %s43
    %s74 = sor.u32 %s72, %s73
    %p75 = scmp.eq.s32.totalorder %s74, 0
    %s77 = sadd.s32 %s76, 1
    %s78 = scalar_select %p75, %s76, %s77
    %p81 = pneg %p75
    %p82 = scmp.eq.s32.totalorder %s24, 1
    %p83 = por %p81, %p82
    %p84 = scmp.ne.s32.totalorder %s76, %s79
    %p85 = scmp.eq.s32.totalorder %s24, 0
    %p86 = por %p84, %p85
    %p87 = scmp.ne.s32.totalorder %s76, %s79
    %p88 = scmp.eq.s32.totalorder %s29, 1
    %p89 = por %p87, %p88
    %p90 = scmp.ne.s32.totalorder %s79, %s80
    %p91 = scmp.eq.s32.totalorder %s29, 0
    %p92 = por %p90, %p91
    %p93 = scmp.ne.s32.totalorder %s79, %s80
    %p94 = scmp.eq.s32.totalorder %s30, 1
    %p95 = por %p93, %p94
    %p97 = scmp.ne.s32.totalorder %s80, %s96
    %p98 = scmp.eq.s32.totalorder %s30, 0
    %p99 = por %p97, %p98
    %s100 = ssub.s32 %s31, %s43
    %p101 = scmp.eq.s32.totalorder %s100, 0
    %s103 = sadd.s32 %s102, 1
    %s104 = scalar_select %p101, %s102, %s103
    %p107 = pneg %p101
    %p108 = scmp.eq.s32.totalorder %s24, 1
    %p109 = por %p107, %p108
    %p110 = scmp.ne.s32.totalorder %s102, %s105
    %p111 = scmp.eq.s32.totalorder %s24, 0
    %p112 = por %p110, %p111
    %p113 = scmp.ne.s32.totalorder %s102, %s105
    %p114 = scmp.eq.s32.totalorder %s29, 1
    %p115 = por %p113, %p114
    %p116 = scmp.ne.s32.totalorder %s105, %s106
    %p117 = scmp.eq.s32.totalorder %s29, 0
    %p118 = por %p116, %p117
    %p119 = scmp.ne.s32.totalorder %s105, %s106
    %p120 = scmp.eq.s32.totalorder %s30, 1
    %p121 = por %p119, %p120
    %p123 = scmp.ne.s32.totalorder %s106, %s122
    %p124 = scmp.eq.s32.totalorder %s30, 0
    %p125 = por %p123, %p124
    %s126 = ssub.s32 %s31, %s43
    %p127 = scmp.eq.s32.totalorder %s126, 0
    %s129 = sadd.s32 %s128, 1
    %s130 = scalar_select %p127, %s128, %s129
    %p133 = pneg %p127
    %p134 = scmp.eq.s32.totalorder %s24, 1
    %p135 = por %p133, %p134
    %p136 = scmp.ne.s32.totalorder %s128, %s131
    %p137 = scmp.eq.s32.totalorder %s24, 0
    %p138 = por %p136, %p137
    %p139 = scmp.ne.s32.totalorder %s128, %s131
    %p140 = scmp.eq.s32.totalorder %s29, 1
    %p141 = por %p139, %p140
    %p142 = scmp.ne.s32.totalorder %s131, %s132
    %p143 = scmp.eq.s32.totalorder %s29, 0
    %p144 = por %p142, %p143
    %p145 = scmp.ne.s32.totalorder %s131, %s132
    %p146 = scmp.eq.s32.totalorder %s30, 1
    %p147 = por %p145, %p146
    %p149 = scmp.ne.s32.totalorder %s132, %s148
    %p150 = scmp.eq.s32.totalorder %s30, 0
    %p151 = por %p149, %p150
    %s152 = ssub.s32 %s32, %s39
    %p153 = scmp.eq.s32.totalorder %s152, 0
    %s155 = sadd.s32 %s154, 1
    %s156 = scalar_select %p153, %s154, %s155
    %p159 = pneg %p153
    %p160 = scmp.eq.s32.totalorder %s24, 1
    %p161 = por %p159, %p160
    %p162 = scmp.ne.s32.totalorder %s154, %s157
    %p163 = scmp.eq.s32.totalorder %s24, 0
    %p164 = por %p162, %p163
    %p165 = scmp.ne.s32.totalorder %s154, %s157
    %p166 = scmp.eq.s32.totalorder %s29, 1
    %p167 = por %p165, %p166
    %p168 = scmp.ne.s32.totalorder %s157, %s158
    %p169 = scmp.eq.s32.totalorder %s29, 0
    %p170 = por %p168, %p169
    %p171 = scmp.ne.s32.totalorder %s157, %s158
    %p172 = scmp.eq.s32.totalorder %s30, 1
    %p173 = por %p171, %p172
    %p175 = scmp.ne.s32.totalorder %s158, %s174
    %p176 = scmp.eq.s32.totalorder %s30, 0
    %p177 = por %p175, %p176
    %s178 = ssub.s32 %s32, %s39
    %p179 = scmp.eq.s32.totalorder %s178, 0
    %s181 = sadd.s32 %s180, 1
    %s182 = scalar_select %p179, %s180, %s181
    %p185 = pneg %p179
    %p186 = scmp.eq.s32.totalorder %s24, 1
    %p187 = por %p185, %p186
    %p188 = scmp.ne.s32.totalorder %s180, %s183
    %p189 = scmp.eq.s32.totalorder %s24, 0
    %p190 = por %p188, %p189
    %p191 = scmp.ne.s32.totalorder %s180, %s183
    %p192 = scmp.eq.s32.totalorder %s29, 1
    %p193 = por %p191, %p192
    %p194 = scmp.ne.s32.totalorder %s183, %s184
    %p195 = scmp.eq.s32.totalorder %s29, 0
    %p196 = por %p194, %p195
    %p197 = scmp.ne.s32.totalorder %s183, %s184
    %p198 = scmp.eq.s32.totalorder %s30, 1
    %p199 = por %p197, %p198
    %p201 = scmp.ne.s32.totalorder %s184, %s200
    %p202 = scmp.eq.s32.totalorder %s30, 0
    %p203 = por %p201, %p202
    %s204 = ssub.s32 %s32, %s39
    %p205 = scmp.eq.s32.totalorder %s204, 0
    %s207 = sadd.s32 %s206, 1
    %s208 = scalar_select %p205, %s206, %s207
    %p211 = pneg %p205
    %p212 = scmp.eq.s32.totalorder %s24, 1
    %p213 = por %p211, %p212
    %p214 = scmp.ne.s32.totalorder %s206, %s209
    %p215 = scmp.eq.s32.totalorder %s24, 0
    %p216 = por %p214, %p215
    %p217 = scmp.ne.s32.totalorder %s206, %s209
    %p218 = scmp.eq.s32.totalorder %s29, 1
    %p219 = por %p217, %p218
    %p220 = scmp.ne.s32.totalorder %s209, %s210
    %p221 = scmp.eq.s32.totalorder %s29, 0
    %p222 = por %p220, %p221
    %p223 = scmp.ne.s32.totalorder %s209, %s210
    %p224 = scmp.eq.s32.totalorder %s30, 1
    %p225 = por %p223, %p224
    %p227 = scmp.ne.s32.totalorder %s210, %s226
    %p228 = scmp.eq.s32.totalorder %s30, 0
    %p229 = por %p227, %p228
    %s231 = sadd.s32 %s230, 1
    %p234 = scmp.eq.s32.totalorder %s24, 1
    %p235 = scmp.ne.s32.totalorder %s230, %s232
    %p236 = scmp.eq.s32.totalorder %s24, 0
    %p237 = por %p235, %p236
    %p238 = scmp.ne.s32.totalorder %s230, %s232
    %p239 = scmp.eq.s32.totalorder %s29, 1
    %p240 = por %p238, %p239
    %p241 = scmp.ne.s32.totalorder %s232, %s233
    %p242 = scmp.eq.s32.totalorder %s29, 0
    %p243 = por %p241, %p242
    %p244 = scmp.ne.s32.totalorder %s232, %s233
    %p245 = scmp.eq.s32.totalorder %s30, 1
    %p246 = por %p244, %p245
    %p248 = scmp.ne.s32.totalorder %s233, %s247
    %p249 = scmp.eq.s32.totalorder %s30, 0
    %p250 = por %p248, %p249
    %s252 = sadd.s32 %s251, 1
    %p255 = scmp.eq.s32.totalorder %s24, 1
    %p256 = scmp.ne.s32.totalorder %s251, %s253
    %p257 = scmp.eq.s32.totalorder %s24, 0
    %p258 = por %p256, %p257
    %p259 = scmp.ne.s32.totalorder %s251, %s253
    %p260 = scmp.eq.s32.totalorder %s29, 1
    %p261 = por %p259, %p260
    %p262 = scmp.ne.s32.totalorder %s253, %s254
    %p263 = scmp.eq.s32.totalorder %s29, 0
    %p264 = por %p262, %p263
    %p265 = scmp.ne.s32.totalorder %s253, %s254
    %p266 = scmp.eq.s32.totalorder %s30, 1
    %p267 = por %p265, %p266
    %p269 = scmp.ne.s32.totalorder %s254, %s268
    %p270 = scmp.eq.s32.totalorder %s30, 0
    %p271 = por %p269, %p270
    %s272 = ssub.s32 %s31, %s43
    %p273 = scmp.eq.s32.totalorder %s272, 0
    %s275 = sadd.s32 %s274, 1
    %s276 = scalar_select %p273, %s274, %s275
    %p279 = pneg %p273
    %p280 = scmp.eq.s32.totalorder %s24, 1
    %p281 = por %p279, %p280
    %p282 = scmp.ne.s32.totalorder %s274, %s277
    %p283 = scmp.eq.s32.totalorder %s24, 0
    %p284 = por %p282, %p283
    %p285 = scmp.ne.s32.totalorder %s274, %s277
    %p286 = scmp.eq.s32.totalorder %s29, 1
    %p287 = por %p285, %p286
    %p288 = scmp.ne.s32.totalorder %s277, %s278
    %p289 = scmp.eq.s32.totalorder %s29, 0
    %p290 = por %p288, %p289
    %p291 = scmp.ne.s32.totalorder %s277, %s278
    %p292 = scmp.eq.s32.totalorder %s30, 1
    %p293 = por %p291, %p292
    %p295 = scmp.ne.s32.totalorder %s278, %s294
    %p296 = scmp.eq.s32.totalorder %s30, 0
    %p297 = por %p295, %p296
    %s299 = sadd.s32 %s298, 1
    %p302 = scmp.eq.s32.totalorder %s24, 1
    %p303 = scmp.ne.s32.totalorder %s298, %s300
    %p304 = scmp.eq.s32.totalorder %s24, 0
    %p305 = por %p303, %p304
    %p306 = scmp.ne.s32.totalorder %s298, %s300
    %p307 = scmp.eq.s32.totalorder %s29, 1
    %p308 = por %p306, %p307
    %p309 = scmp.ne.s32.totalorder %s300, %s301
    %p310 = scmp.eq.s32.totalorder %s29, 0
    %p311 = por %p309, %p310
    %p312 = scmp.ne.s32.totalorder %s300, %s301
    %p313 = scmp.eq.s32.totalorder %s30, 1
    %p314 = por %p312, %p313
    %p316 = scmp.ne.s32.totalorder %s301, %s315
    %p317 = scmp.eq.s32.totalorder %s30, 0
    %p318 = por %p316, %p317
    %s320 = sadd.s32 %s319, 1
    %p323 = scmp.eq.s32.totalorder %s24, 1
    %p324 = scmp.ne.s32.totalorder %s319, %s321
    %p325 = scmp.eq.s32.totalorder %s24, 0
    %p326 = por %p324, %p325
    %p327 = scmp.ne.s32.totalorder %s319, %s321
    %p328 = scmp.eq.s32.totalorder %s29, 1
    %p329 = por %p327, %p328
    %p330 = scmp.ne.s32.totalorder %s321, %s322
    %p331 = scmp.eq.s32.totalorder %s29, 0
    %p332 = por %p330, %p331
    %p333 = scmp.ne.s32.totalorder %s321, %s322
    %p334 = scmp.eq.s32.totalorder %s30, 1
    %p335 = por %p333, %p334
    %p337 = scmp.ne.s32.totalorder %s322, %s336
    %p338 = scmp.eq.s32.totalorder %s30, 0
    %p339 = por %p337, %p338
    %s341 = sadd.s32 %s340, 1
    %p344 = scmp.eq.s32.totalorder %s24, 1
    %p345 = scmp.ne.s32.totalorder %s340, %s342
    %p346 = scmp.eq.s32.totalorder %s24, 0
    %p347 = por %p345, %p346
    %p348 = scmp.ne.s32.totalorder %s340, %s342
    %p349 = scmp.eq.s32.totalorder %s29, 1
    %p350 = por %p348, %p349
    %p351 = scmp.ne.s32.totalorder %s342, %s343
    %p352 = scmp.eq.s32.totalorder %s29, 0
    %p353 = por %p351, %p352
    %p354 = scmp.ne.s32.totalorder %s342, %s343
    %p355 = scmp.eq.s32.totalorder %s30, 1
    %p356 = por %p354, %p355
    %p358 = scmp.ne.s32.totalorder %s343, %s357
    %p359 = scmp.eq.s32.totalorder %s30, 0
    %p360 = por %p358, %p359
    %s362 = sadd.s32 %s361, 1
    %p365 = scmp.eq.s32.totalorder %s24, 1
    %p366 = scmp.ne.s32.totalorder %s361, %s363
    %p367 = scmp.eq.s32.totalorder %s24, 0
    %p368 = por %p366, %p367
    %p369 = scmp.ne.s32.totalorder %s361, %s363
    %p370 = scmp.eq.s32.totalorder %s29, 1
    %p371 = por %p369, %p370
    %p372 = scmp.ne.s32.totalorder %s363, %s364
    %p373 = scmp.eq.s32.totalorder %s29, 0
    %p374 = por %p372, %p373
    %p375 = scmp.ne.s32.totalorder %s363, %s364
    %p376 = scmp.eq.s32.totalorder %s30, 1
    %p377 = por %p375, %p376
    %p379 = scmp.ne.s32.totalorder %s364, %s378
    %p380 = scmp.eq.s32.totalorder %s30, 0
    %p381 = por %p379, %p380
    %s382 = ssub.s32 %s32, %s39
    %s383 = ssub.s32 %s31, %s43
    %s384 = sor.u32 %s382, %s383
    %p385 = scmp.eq.s32.totalorder %s384, 0
    %s387 = sadd.s32 %s386, 1
    %s388 = scalar_select %p385, %s386, %s387
    %p391 = pneg %p385
    %p392 = scmp.eq.s32.totalorder %s24, 1
    %p393 = por %p391, %p392
    %p394 = scmp.ne.s32.totalorder %s386, %s389
    %p395 = scmp.eq.s32.totalorder %s24, 0
    %p396 = por %p394, %p395
    %p397 = scmp.ne.s32.totalorder %s386, %s389
    %p398 = scmp.eq.s32.totalorder %s29, 1
    %p399 = por %p397, %p398
    %p400 = scmp.ne.s32.totalorder %s389, %s390
    %p401 = scmp.eq.s32.totalorder %s29, 0
    %p402 = por %p400, %p401
    %p403 = scmp.ne.s32.totalorder %s389, %s390
    %p404 = scmp.eq.s32.totalorder %s30, 1
    %p405 = por %p403, %p404
    %p407 = scmp.ne.s32.totalorder %s390, %s406
    %p408 = scmp.eq.s32.totalorder %s30, 0
    %p409 = por %p407, %p408
    %s410 = ssub.s32 %s31, %s43
    %p411 = scmp.eq.s32.totalorder %s410, 0
    %s413 = sadd.s32 %s412, 1
    %s414 = scalar_select %p411, %s412, %s413
    %p417 = pneg %p411
    %p418 = scmp.eq.s32.totalorder %s24, 1
    %p419 = por %p417, %p418
    %p420 = scmp.ne.s32.totalorder %s412, %s415
    %p421 = scmp.eq.s32.totalorder %s24, 0
    %p422 = por %p420, %p421
    %p423 = scmp.ne.s32.totalorder %s412, %s415
    %p424 = scmp.eq.s32.totalorder %s29, 1
    %p425 = por %p423, %p424
    %p426 = scmp.ne.s32.totalorder %s415, %s416
    %p427 = scmp.eq.s32.totalorder %s29, 0
    %p428 = por %p426, %p427
    %p429 = scmp.ne.s32.totalorder %s415, %s416
    %p430 = scmp.eq.s32.totalorder %s30, 1
    %p431 = por %p429, %p430
    %p433 = scmp.ne.s32.totalorder %s416, %s432
    %p434 = scmp.eq.s32.totalorder %s30, 0
    %p435 = por %p433, %p434
    %s436 = ssub.s32 %s31, %s43
    %p437 = scmp.eq.s32.totalorder %s436, 0
    %s439 = sadd.s32 %s438, 1
    %s440 = scalar_select %p437, %s438, %s439
    %p443 = pneg %p437
    %p444 = scmp.eq.s32.totalorder %s24, 1
    %p445 = por %p443, %p444
    %p446 = scmp.ne.s32.totalorder %s438, %s441
    %p447 = scmp.eq.s32.totalorder %s24, 0
    %p448 = por %p446, %p447
    %p449 = scmp.ne.s32.totalorder %s438, %s441
    %p450 = scmp.eq.s32.totalorder %s29, 1
    %p451 = por %p449, %p450
    %p452 = scmp.ne.s32.totalorder %s441, %s442
    %p453 = scmp.eq.s32.totalorder %s29, 0
    %p454 = por %p452, %p453
    %p455 = scmp.ne.s32.totalorder %s441, %s442
    %p456 = scmp.eq.s32.totalorder %s30, 1
    %p457 = por %p455, %p456
    %p459 = scmp.ne.s32.totalorder %s442, %s458
    %p460 = scmp.eq.s32.totalorder %s30, 0
    %p461 = por %p459, %p460
    %s462 = ssub.s32 %s31, %s43
    %p463 = scmp.eq.s32.totalorder %s462, 0
    %s465 = sadd.s32 %s464, 1
    %s466 = scalar_select %p463, %s464, %s465
    %p469 = pneg %p463
    %p470 = scmp.eq.s32.totalorder %s24, 1
    %p471 = por %p469, %p470
    %p472 = scmp.ne.s32.totalorder %s464, %s467
    %p473 = scmp.eq.s32.totalorder %s24, 0
    %p474 = por %p472, %p473
    %p475 = scmp.ne.s32.totalorder %s464, %s467
    %p476 = scmp.eq.s32.totalorder %s29, 1
    %p477 = por %p475, %p476
    %p478 = scmp.ne.s32.totalorder %s467, %s468
    %p479 = scmp.eq.s32.totalorder %s29, 0
    %p480 = por %p478, %p479
    %p481 = scmp.ne.s32.totalorder %s467, %s468
    %p482 = scmp.eq.s32.totalorder %s30, 1
    %p483 = por %p481, %p482
    %p485 = scmp.ne.s32.totalorder %s468, %s484
    %p486 = scmp.eq.s32.totalorder %s30, 0
    %p487 = por %p485, %p486
    %p488 = scmp.le.s32.totalorder 1, %s24
    %p489 = scmp.lt.s32.totalorder %s24, 3
    %p490 = pnand %p488, %p489
    %p491 = pneg %p490
    // Predicated region
    $region9: #{decoder_forward.1} parent=5 // pred_check
      _
    $region10: #{decoder_forward.1} parent=5 // pred_check_branch
      %493 = sbr.rel (%p490) target = $region12
    $region11: #{decoder_forward.1} parent=5 // pred_region
      %s494 = ssub.s32 %s24, 1
      // Predicated region
      $region13: #{decoder_forward.1} parent=11 // pred_check
        %p495 = pneg %p118
      $region14: #{decoder_forward.1} parent=11 // pred_check_branch
        %497 = sbr.rel (%p495) target = $region16
      $region15: #{decoder_forward.1} parent=11 // pred_region
        %s498 = smul.u32 2, %s33
        %p499 = scmp.lt.s32.totalorder %s498, 1
        %s500 = scalar_select %p499, %s498, 1
        %s501 = smul.addr %s500, 4
        %s502 = scalar_lea.vmem %s2, %s501
        %s503 = smul.u32 2, %s33
      $region16: #{decoder_forward.1} parent=11 // pred_fallthru
        _
      // Predicated region
      $region17: #{decoder_forward.1} parent=11 // pred_check
        %p504 = pneg %p144
      $region18: #{decoder_forward.1} parent=11 // pred_check_branch
        %506 = sbr.rel (%p504) target = $region20
      $region19: #{decoder_forward.1} parent=11 // pred_region
        %s507 = smul.u32 2, %s33
        %p508 = scmp.lt.s32.totalorder %s507, 1
        %s509 = scalar_select %p508, %s507, 1
        %s510 = smul.addr %s509, 4
        %s511 = scalar_lea.vmem %s3, %s510
        %s512 = smul.u32 2, %s33
      $region20: #{decoder_forward.1} parent=11 // pred_fallthru
        _
      // Predicated region
      $region21: #{decoder_forward.1} parent=11 // pred_check
        %p513 = pneg %p243
      $region22: #{decoder_forward.1} parent=11 // pred_check_branch
        %515 = sbr.rel (%p513) target = $region24
      $region23: #{decoder_forward.1} parent=11 // pred_region
        _
      $region24: #{decoder_forward.1} parent=11 // pred_fallthru
        _
      // Predicated region
      $region25: #{decoder_forward.1} parent=11 // pred_check
        %p516 = pneg %p264
      $region26: #{decoder_forward.1} parent=11 // pred_check_branch
        %518 = sbr.rel (%p516) target = $region28
      $region27: #{decoder_forward.1} parent=11 // pred_region
        _
      $region28: #{decoder_forward.1} parent=11 // pred_fallthru
        _
      // Predicated region
      $region29: #{decoder_forward.1} parent=11 // pred_check
        %p519 = pneg %p290
      $region30: #{decoder_forward.1} parent=11 // pred_check_branch
        %521 = sbr.rel (%p519) target = $region32
      $region31: #{decoder_forward.1} parent=11 // pred_region
        %s522 = smul.u32 2, %s33
        %p523 = scmp.lt.s32.totalorder %s522, 1
        %s524 = scalar_select %p523, %s522, 1
        %s525 = smul.addr %s524, 8
        %s526 = scalar_lea.vmem %s9, %s525
        %s527 = smul.u32 2, %s33
      $region32: #{decoder_forward.1} parent=11 // pred_fallthru
        _
      // Predicated region
      $region33: #{decoder_forward.1} parent=11 // pred_check
        %p528 = pneg %p311
      $region34: #{decoder_forward.1} parent=11 // pred_check_branch
        %530 = sbr.rel (%p528) target = $region36
      $region35: #{decoder_forward.1} parent=11 // pred_region
        _
      $region36: #{decoder_forward.1} parent=11 // pred_fallthru
        _
      // Predicated region
      $region37: #{decoder_forward.1} parent=11 // pred_check
        %p531 = pneg %p332
      $region38: #{decoder_forward.1} parent=11 // pred_check_branch
        %533 = sbr.rel (%p531) target = $region40
      $region39: #{decoder_forward.1} parent=11 // pred_region
        _
      $region40: #{decoder_forward.1} parent=11 // pred_fallthru
        _
      // Predicated region
      $region41: #{decoder_forward.1} parent=11 // pred_check
        %p534 = pneg %p353
      $region42: #{decoder_forward.1} parent=11 // pred_check_branch
        %536 = sbr.rel (%p534) target = $region44
      $region43: #{decoder_forward.1} parent=11 // pred_region
        _
      $region44: #{decoder_forward.1} parent=11 // pred_fallthru
        _
      // Predicated region
      $region45: #{decoder_forward.1} parent=11 // pred_check
        %p537 = pneg %p374
      $region46: #{decoder_forward.1} parent=11 // pred_check_branch
        %539 = sbr.rel (%p537) target = $region48
      $region47: #{decoder_forward.1} parent=11 // pred_region
        _
      $region48: #{decoder_forward.1} parent=11 // pred_fallthru
        _
    $region12: #{decoder_forward.1} parent=5 // pred_fallthru
      _
    %p540 = scmp.lt.s32.totalorder %s24, 2
    // Predicated region
    $region49: #{decoder_forward.1} parent=5 // pred_check
      %p541 = pneg %p540
    $region50: #{decoder_forward.1} parent=5 // pred_check_branch
      %543 = sbr.rel (%p541) target = $region52
    $region51: #{decoder_forward.1} parent=5 // pred_region
      // Predicated region
      $region53: #{decoder_forward.1} parent=51 // pred_check
        %p544 = pneg %p58
      $region54: #{decoder_forward.1} parent=51 // pred_check_branch
        %546 = sbr.rel (%p544) target = $region56
      $region55: #{decoder_forward.1} parent=51 // pred_region
        %s547 = smul.u32 2, %s31
        %p548 = scmp.lt.s32.totalorder %s32, 1
        %s549 = scalar_select %p548, %s32, 1
        %p550 = scmp.lt.s32.totalorder %s547, 1
        %s551 = scalar_select %p550, %s547, 1
        %s552 = smul.addr %s549, 2
        %s553 = sadd.s32 %s551, %s552
        %s554 = smul.addr %s553, 4
        %s555 = scalar_lea.vmem %s0, %s554
        %s556 = smul.u32 2, %s31
      $region56: #{decoder_forward.1} parent=51 // pred_fallthru
        _
      // Predicated region
      $region57: #{decoder_forward.1} parent=51 // pred_check
        %p557 = pneg %p86
      $region58: #{decoder_forward.1} parent=51 // pred_check_branch
        %559 = sbr.rel (%p557) target = $region60
      $region59: #{decoder_forward.1} parent=51 // pred_region
        %s560 = smul.u32 2, %s31
        %p561 = scmp.lt.s32.totalorder %s32, 1
        %s562 = scalar_select %p561, %s32, 1
        %p563 = scmp.lt.s32.totalorder %s560, 1
        %s564 = scalar_select %p563, %s560, 1
        %s565 = smul.addr %s562, 2
        %s566 = sadd.s32 %s564, %s565
        %s567 = smul.addr %s566, 4
        %s568 = scalar_lea.vmem %s1, %s567
        %s569 = smul.u32 2, %s31
      $region60: #{decoder_forward.1} parent=51 // pred_fallthru
        _
      // Predicated region
      $region61: #{decoder_forward.1} parent=51 // pred_check
        %p570 = pneg %p164
      $region62: #{decoder_forward.1} parent=51 // pred_check_branch
        %572 = sbr.rel (%p570) target = $region64
      $region63: #{decoder_forward.1} parent=51 // pred_region
        %p573 = scmp.lt.s32.totalorder %s32, 1
        %s574 = scalar_select %p573, %s32, 1
        %s575 = smul.addr %s574, 4
        %s576 = smul.addr %s575, 4
        %s577 = scalar_lea.vmem %s4, %s576
      $region64: #{decoder_forward.1} parent=51 // pred_fallthru
        _
      // Predicated region
      $region65: #{decoder_forward.1} parent=51 // pred_check
        %p578 = pneg %p190
      $region66: #{decoder_forward.1} parent=51 // pred_check_branch
        %580 = sbr.rel (%p578) target = $region68
      $region67: #{decoder_forward.1} parent=51 // pred_region
        %p581 = scmp.lt.s32.totalorder %s32, 1
        %s582 = scalar_select %p581, %s32, 1
        %s583 = smul.addr %s582, 4
        %s584 = smul.addr %s583, 4
        %s585 = scalar_lea.vmem %s5, %s584
      $region68: #{decoder_forward.1} parent=51 // pred_fallthru
        _
      // Predicated region
      $region69: #{decoder_forward.1} parent=51 // pred_check
        %p586 = pneg %p216
      $region70: #{decoder_forward.1} parent=51 // pred_check_branch
        %588 = sbr.rel (%p586) target = $region72
      $region71: #{decoder_forward.1} parent=51 // pred_region
        %p589 = scmp.lt.s32.totalorder %s32, 1
        %s590 = scalar_select %p589, %s32, 1
        %s591 = scalar_lea.vmem %s6, %s590
      $region72: #{decoder_forward.1} parent=51 // pred_fallthru
        _
    $region52: #{decoder_forward.1} parent=5 // pred_fallthru
      _
    %p592 = scmp.le.s32.totalorder 1, %s24
    %p593 = scmp.lt.s32.totalorder %s24, 3
    %p594 = pnand %p592, %p593
    %p595 = pneg %p594
    // Predicated region
    $region73: #{decoder_forward.1} parent=5 // pred_check
      _
    $region74: #{decoder_forward.1} parent=5 // pred_check_branch
      %597 = sbr.rel (%p594) target = $region76
    $region75: #{decoder_forward.1} parent=5 // pred_region
      %s598 = ssub.s32 %s24, 1
      %s599 = smul.u32 2, %s33
      %p600 = scmp.lt.s32.totalorder %s34, 1
      %s601 = scalar_select %p600, %s34, 1
      %p602 = scmp.lt.s32.totalorder %s599, 1
      %s603 = scalar_select %p602, %s599, 1
      %s604 = smul.addr %s601, 2
      %s605 = sadd.s32 %s603, %s604
      %s606 = smul.addr %s605, 4
      %s607 = scalar_lea.vmem %s0, %s606
      %p608 = pneg %p64
      %p609 = pneg %p61
      %s610 = smul.u32 2, %s33
      %p611 = scmp.lt.s32.totalorder %s34, 1
      %s612 = scalar_select %p611, %s34, 1
      %p613 = scmp.lt.s32.totalorder %s610, 1
      %s614 = scalar_select %p613, %s610, 1
      %s615 = smul.addr %s612, 2
      %s616 = sadd.s32 %s614, %s615
      %s617 = smul.addr %s616, 4
      %s618 = scalar_lea.vmem %s1, %s617
      %p619 = pneg %p92
      %p620 = pneg %p89
      %s621 = smul.u32 2, %s33
      %p622 = scmp.lt.s32.totalorder %s621, 1
      %s623 = scalar_select %p622, %s621, 1
      %s624 = smul.addr %s623, 4
      %s625 = scalar_lea.vmem %s2, %s624
      %p626 = pneg %p118
      %p627 = pneg %p115
      %s628 = smul.u32 2, %s33
      %p629 = scmp.lt.s32.totalorder %s628, 1
      %s630 = scalar_select %p629, %s628, 1
      %s631 = smul.addr %s630, 4
      %s632 = scalar_lea.vmem %s3, %s631
      %p633 = pneg %p144
      %p634 = pneg %p141
      %p635 = scmp.lt.s32.totalorder %s34, 1
      %s636 = scalar_select %p635, %s34, 1
      %s637 = smul.addr %s636, 4
      %s638 = smul.addr %s637, 4
      %s639 = scalar_lea.vmem %s4, %s638
      %p640 = pneg %p170
      %p641 = pneg %p167
      %p642 = scmp.lt.s32.totalorder %s34, 1
      %s643 = scalar_select %p642, %s34, 1
      %s644 = smul.addr %s643, 4
      %s645 = smul.addr %s644, 4
      %s646 = scalar_lea.vmem %s5, %s645
      %p647 = pneg %p196
      %p648 = pneg %p193
      %p649 = scmp.lt.s32.totalorder %s34, 1
      %s650 = scalar_select %p649, %s34, 1
      %s651 = scalar_lea.vmem %s6, %s650
      %p652 = pneg %p222
      %p653 = pneg %p219
      %p654 = pneg %p243
      %p655 = pneg %p240
      %p656 = pneg %p264
      %p657 = pneg %p261
      %s658 = smul.u32 2, %s33
      %p659 = scmp.lt.s32.totalorder %s658, 1
      %s660 = scalar_select %p659, %s658, 1
      %s661 = smul.addr %s660, 8
      %s662 = scalar_lea.vmem %s9, %s661
      %p663 = pneg %p290
      %p664 = pneg %p287
      %p665 = pneg %p311
      %p666 = pneg %p308
      %p667 = pneg %p332
      %p668 = pneg %p329
      %p669 = pneg %p353
      %p670 = pneg %p350
      %p671 = pneg %p374
      %p672 = pneg %p371
      %p673 = pneg %p402
      %p674 = pneg %p399
      %s675 = smul.u32 2, %s33
      %p676 = scmp.lt.s32.totalorder %s34, 1
      %s677 = scalar_select %p676, %s34, 1
      %p678 = scmp.lt.s32.totalorder %s675, 1
      %s679 = scalar_select %p678, %s675, 1
      %s680 = smul.addr %s677, 2
      %s681 = sadd.s32 %s679, %s680
      %s682 = smul.addr %s681, 8
      %s683 = scalar_lea.vmem %s14, %s682
      %p684 = pneg %p428
      %p685 = pneg %p425
      %s686 = smul.u32 2, %s33
      %p687 = scmp.lt.s32.totalorder %s686, 1
      %s688 = scalar_select %p687, %s686, 1
      %s689 = smul.addr %s688, 8
      %s690 = scalar_lea.vmem %s15, %s689
      %p691 = pneg %p454
      %p692 = pneg %p451
      %s693 = smul.u32 2, %s33
      %p694 = scmp.lt.s32.totalorder %s693, 1
      %s695 = scalar_select %p694, %s693, 1
      %s696 = smul.addr %s695, 8
      %s697 = scalar_lea.vmem %s16, %s696
      %p698 = pneg %p480
      %p699 = pneg %p477
      %s700 = smul.u32 2, %s33
      %p701 = scmp.lt.s32.totalorder %s700, 1
      %s702 = scalar_select %p701, %s700, 1
      %s703 = smul.addr %s702, 8
      %s704 = scalar_lea.vmem %s17, %s703
      %s705 = smul.u32 2, %s33
      %p706 = scmp.lt.s32.totalorder %s34, 1
      %s707 = scalar_select %p706, %s34, 1
      %p708 = scmp.lt.s32.totalorder %s705, 1
      %s709 = scalar_select %p708, %s705, 1
      %s710 = smul.addr %s707, 2
      %s711 = sadd.s32 %s709, %s710
      %s712 = smul.addr %s711, 4
      %s713 = scalar_lea.vmem %s0, %s712
      %s714 = smul.u32 2, %s33
      %s715 = smul.u32 2, %s33
      %p716 = scmp.lt.s32.totalorder %s34, 1
      %s717 = scalar_select %p716, %s34, 1
      %p718 = scmp.lt.s32.totalorder %s715, 1
      %s719 = scalar_select %p718, %s715, 1
      %s720 = smul.addr %s717, 2
      %s721 = sadd.s32 %s719, %s720
      %s722 = smul.addr %s721, 4
      %s723 = scalar_lea.vmem %s1, %s722
      %s724 = smul.u32 2, %s33
      %s725 = smul.u32 2, %s33
      %p726 = scmp.lt.s32.totalorder %s725, 1
      %s727 = scalar_select %p726, %s725, 1
      %s728 = smul.addr %s727, 4
      %s729 = scalar_lea.vmem %s2, %s728
      %s730 = smul.u32 2, %s33
      %s731 = smul.u32 2, %s33
      %p732 = scmp.lt.s32.totalorder %s731, 1
      %s733 = scalar_select %p732, %s731, 1
      %s734 = smul.addr %s733, 4
      %s735 = scalar_lea.vmem %s3, %s734
      %s736 = smul.u32 2, %s33
      %p737 = scmp.lt.s32.totalorder %s34, 1
      %s738 = scalar_select %p737, %s34, 1
      %s739 = smul.addr %s738, 4
      %s740 = smul.addr %s739, 4
      %s741 = scalar_lea.vmem %s4, %s740
      %p742 = scmp.lt.s32.totalorder %s34, 1
      %s743 = scalar_select %p742, %s34, 1
      %s744 = smul.addr %s743, 4
      %s745 = smul.addr %s744, 4
      %s746 = scalar_lea.vmem %s5, %s745
      %p747 = scmp.lt.s32.totalorder %s34, 1
      %s748 = scalar_select %p747, %s34, 1
      %s749 = scalar_lea.vmem %s6, %s748
      %s750 = smul.u32 2, %s33
      %p751 = scmp.lt.s32.totalorder %s750, 1
      %s752 = scalar_select %p751, %s750, 1
      %s753 = smul.addr %s752, 8
      %s754 = scalar_lea.vmem %s9, %s753
      %s755 = smul.u32 2, %s33
      %s756 = smul.u32 2, %s33
      %p757 = scmp.lt.s32.totalorder %s34, 1
      %s758 = scalar_select %p757, %s34, 1
      %p759 = scmp.lt.s32.totalorder %s756, 1
      %s760 = scalar_select %p759, %s756, 1
      %s761 = smul.addr %s758, 2
      %s762 = sadd.s32 %s760, %s761
      %s763 = smul.addr %s762, 8
      %s764 = scalar_lea.vmem %s14, %s763
      %s765 = smul.u32 2, %s33
      %s766 = smul.u32 2, %s33
      %p767 = scmp.lt.s32.totalorder %s766, 1
      %s768 = scalar_select %p767, %s766, 1
      %s769 = smul.addr %s768, 8
      %s770 = scalar_lea.vmem %s15, %s769
      %s771 = smul.u32 2, %s33
      %s772 = smul.u32 2, %s33
      %p773 = scmp.lt.s32.totalorder %s772, 1
      %s774 = scalar_select %p773, %s772, 1
      %s775 = smul.addr %s774, 8
      %s776 = scalar_lea.vmem %s16, %s775
      %s777 = smul.u32 2, %s33
      %s778 = smul.u32 2, %s33
      %p779 = scmp.lt.s32.totalorder %s778, 1
      %s780 = scalar_select %p779, %s778, 1
      %s781 = smul.addr %s780, 8
      %s782 = scalar_lea.vmem %s17, %s781
      %s783 = smul.u32 2, %s33
      %p785 = scmp.eq.s32.totalorder %s34, 0
      // Predicated region
      $region77: #{decoder_forward.1} parent=75 // pred_check
        %p786 = pneg %p785
      $region78: #{decoder_forward.1} parent=75 // pred_check_branch
        %788 = sbr.rel (%p786) target = $region80
      $region79: #{decoder_forward.1} parent=75 // pred_region
        %789 = vst [vmem:[#allocation2] sm:$0xff] 0.0
        %790 = vst [vmem:[#allocation2 + $0x8] sm:$0xff] 0.0
        %791 = vst [vmem:[#allocation3] sm:$0xff] 0.0
        %792 = vst [vmem:[#allocation3 + $0x8] sm:$0xff] 0.0
      $region80: #{decoder_forward.1} parent=75 // pred_fallthru
        _
      %v793 = vld [vmem:[%s741] sm:$0xf]
      %v794 = vld [vmem:[%s741 + $0x4] sm:$0xf]
      %v795 = vld [vmem:[%s741 + $0x8] sm:$0xf]
      %v796 = vld [vmem:[%s741 + $0xc] sm:$0xf]
      %v797 = vld [vmem:[%s746] sm:$0xf]
      %v798 = vld [vmem:[%s746 + $0x4] sm:$0xf]
      %v799 = vld [vmem:[%s746 + $0x8] sm:$0xf]
      %v800 = vld [vmem:[%s746 + $0xc] sm:$0xf]
      %v801 = vld [vmem:[%s749] sm:$0x1]
      %v802 = vld [vmem:[%s729] sm:$0xf]
      %v803 = vld [vmem:[%s729 + $0x4] sm:$0xf]
      %v804 = vld [vmem:[%s713] sm:$0xf]
      %v805 = vld [vmem:[%s713 + $0x4] sm:$0xf]
      %v808 = vunpack.c.l.b16 %v804
      %v809 = vunpack.c.l.b16 %v805
      %v810 = vpack.c.b16 %v809, %v808
      %v815 = vunpack.c.l.b16 %v797
      %v816 = vunpack.c.l.b16 %v798
      %v817 = vunpack.c.l.b16 %v799
      %v818 = vunpack.c.l.b16 %v800
      %v819 = vpack.c.b16 %v816, %v815
      %v820 = vpack.c.b16 %v818, %v817
      %vm823 = vcmask 261120
      %v825 = vsel %vm823, %v810, 0
      %827 = vmatpush.bf16.msra.mxu0 0
      %828 = vmatpush.bf16.msra.mxu0 0
      %829 = vmatpush.bf16.msra.mxu0 0
      %830 = vmatpush.bf16.msra.mxu0 0
      %831 = vmatpush.bf16.msra.mxu0 0
      %832 = vmatpush.bf16.msra.mxu0 0
      %833 = vmatpush.bf16.msra.mxu0 %v820
      %834 = vmatpush.bf16.msra.mxu0 %v819
      %835 = vmatmul.bf16.gmra.mxu0 %v825
      %v836 = vpop.f32.mrf.mxu0
      %v837 = vadd.f32 0.0, %v836
      %v838 = vpop.f32.mrf.mxu0
      %v839 = vadd.f32 0.0, %v838
      %840 = vdwg.mxu0
      %v843 = vunpack.c.l.b16 %v802
      %v844 = vunpack.c.l.b16 %v803
      %v845 = vpack.c.b16 %v844, %v843
      %v850 = vunpack.c.l.b16 %v793
      %v851 = vunpack.c.l.b16 %v794
      %v852 = vunpack.c.l.b16 %v795
      %v853 = vunpack.c.l.b16 %v796
      %v854 = vpack.c.b16 %v851, %v850
      %v855 = vpack.c.b16 %v853, %v852
      %v859 = vsel %vm823, %v845, 0
      %861 = vmatpush.bf16.msra.mxu0 0
      %862 = vmatpush.bf16.msra.mxu0 0
      %863 = vmatpush.bf16.msra.mxu0 0
      %864 = vmatpush.bf16.msra.mxu0 0
      %865 = vmatpush.bf16.msra.mxu0 0
      %866 = vmatpush.bf16.msra.mxu0 0
      %867 = vmatpush.bf16.msra.mxu0 %v855
      %868 = vmatpush.bf16.msra.mxu0 %v854
      %869 = vmatmul.bf16.gmra.mxu0 %v859
      %v870 = vpop.f32.mrf.mxu0
      %v871 = vadd.f32 %v837, %v870
      %v872 = vpop.f32.mrf.mxu0
      %v873 = vadd.f32 %v839, %v872
      %874 = vdwg.mxu0
      %v876 = vperm.slane %v801, 0
      %v878 = vadd.f32 %v871, %v876
      %v879 = vadd.f32 %v873, %v876
      %v880 = vld [vmem:[%s735] sm:$0xf]
      %v881 = vld [vmem:[%s735 + $0x4] sm:$0xf]
      %v882 = vld [vmem:[%s723] sm:$0xf]
      %v883 = vld [vmem:[%s723 + $0x4] sm:$0xf]
      %v886 = vunpack.c.l.b16 %v882
      %v887 = vunpack.c.l.b16 %v883
      %v888 = vpack.c.b16 %v887, %v886
      %v890 = vsel %vm823, %v888, 0
      %892 = vmatpush.bf16.msra.mxu0 0
      %893 = vmatpush.bf16.msra.mxu0 0
      %894 = vmatpush.bf16.msra.mxu0 0
      %895 = vmatpush.bf16.msra.mxu0 0
      %896 = vmatpush.bf16.msra.mxu0 0
      %897 = vmatpush.bf16.msra.mxu0 0
      %898 = vmatpush.bf16.msra.mxu0 %v820
      %899 = vmatpush.bf16.msra.mxu0 %v819
      %900 = vmatmul.bf16.gmra.mxu0 %v890
      %v901 = vpop.f32.mrf.mxu0
      %v902 = vadd.f32 0.0, %v901
      %v903 = vpop.f32.mrf.mxu0
      %v904 = vadd.f32 0.0, %v903
      %905 = vdwg.mxu0
      %v908 = vunpack.c.l.b16 %v880
      %v909 = vunpack.c.l.b16 %v881
      %v910 = vpack.c.b16 %v909, %v908
      %v912 = vsel %vm823, %v910, 0
      %914 = vmatpush.bf16.msra.mxu0 0
      %915 = vmatpush.bf16.msra.mxu0 0
      %916 = vmatpush.bf16.msra.mxu0 0
      %917 = vmatpush.bf16.msra.mxu0 0
      %918 = vmatpush.bf16.msra.mxu0 0
      %919 = vmatpush.bf16.msra.mxu0 0
      %920 = vmatpush.bf16.msra.mxu0 %v855
      %921 = vmatpush.bf16.msra.mxu0 %v854
      %922 = vmatmul.bf16.gmra.mxu0 %v912
      %v923 = vpop.f32.mrf.mxu0
      %v924 = vadd.f32 %v902, %v923
      %v925 = vpop.f32.mrf.mxu0
      %v926 = vadd.f32 %v904, %v925
      %927 = vdwg.mxu0
      %v928 = vadd.f32 %v924, %v876
      %v929 = vadd.f32 %v926, %v876
      %v930 = vld [vmem:[#allocation2] sm:$0xff]
      %v931 = vld [vmem:[#allocation2 + $0x8] sm:$0xff]
      %v932 = vadd.f32 %v930, %v878
      %v933 = vadd.f32 %v931, %v879
      %934 = vst [vmem:[#allocation2] sm:$0xff] %v932
      %935 = vst [vmem:[#allocation2 + $0x8] sm:$0xff] %v933
      %v936 = vld [vmem:[#allocation3] sm:$0xff]
      %v937 = vld [vmem:[#allocation3 + $0x8] sm:$0xff]
      %v938 = vadd.f32 %v936, %v928
      %v939 = vadd.f32 %v937, %v929
      %940 = vst [vmem:[#allocation3] sm:$0xff] %v938
      %941 = vst [vmem:[#allocation3 + $0x8] sm:$0xff] %v939
      %942 = vst [vmem:[%s764] sm:$0xff] %v878
      %943 = vst [vmem:[%s764 + $0x8] sm:$0xff] %v879
      %p944 = scmp.eq.s32.totalorder %s34, 1
      // Predicated region
      $region81: #{decoder_forward.1} parent=75 // pred_check
        %p945 = pneg %p944
      $region82: #{decoder_forward.1} parent=75 // pred_check_branch
        %947 = sbr.rel (%p945) target = $region84
      $region83: #{decoder_forward.1} parent=75 // pred_region
        %v948 = vld [vmem:[#allocation2] sm:$0xff]
        %v949 = vld [vmem:[#allocation2 + $0x8] sm:$0xff]
        %v950 = vld [vmem:[#allocation3] sm:$0xff]
        %v951 = vld [vmem:[#allocation3 + $0x8] sm:$0xff]
        %v952 = vld [vmem:[%s7] sm:$0xff]
        %v953 = vld [vmem:[%s7 + $0x8] sm:$0xff]
        %v954 = vld [vmem:[%s7 + $0x10] sm:$0xff]
        %v955 = vld [vmem:[%s7 + $0x18] sm:$0xff]
        %v956 = vld [vmem:[%s7 + $0x20] sm:$0xff]
        %v957 = vld [vmem:[%s7 + $0x28] sm:$0xff]
        %v958 = vld [vmem:[%s7 + $0x30] sm:$0xff]
        %v959 = vld [vmem:[%s7 + $0x38] sm:$0xff]
        %v960 = vld [vmem:[%s7 + $0x40] sm:$0xff]
        %v961 = vld [vmem:[%s7 + $0x48] sm:$0xff]
        %v962 = vld [vmem:[%s7 + $0x50] sm:$0xff]
        %v963 = vld [vmem:[%s7 + $0x58] sm:$0xff]
        %v964 = vld [vmem:[%s7 + $0x60] sm:$0xff]
        %v965 = vld [vmem:[%s7 + $0x68] sm:$0xff]
        %v966 = vld [vmem:[%s7 + $0x70] sm:$0xff]
        %v967 = vld [vmem:[%s7 + $0x78] sm:$0xff]
        %v968 = vld [vmem:[%s8] sm:$0x1]
        %v970 = vperm.slane %v968, 0
        %972 = vmatpush.msra.mxu0 %v967
        %973 = vmatpush.msra.mxu0 %v966
        %974 = vmatpush.msra.mxu0 %v965
        %975 = vmatpush.msra.mxu0 %v964
        %976 = vmatpush.msra.mxu0 %v963
        %977 = vmatpush.msra.mxu0 %v962
        %978 = vmatpush.msra.mxu0 %v961
        %979 = vmatpush.msra.mxu0 %v960
        %980 = vmatpush.msra.mxu0 %v959
        %981 = vmatpush.msra.mxu0 %v958
        %982 = vmatpush.msra.mxu0 %v957
        %983 = vmatpush.msra.mxu0 %v956
        %984 = vmatpush.msra.mxu0 %v955
        %985 = vmatpush.msra.mxu0 %v954
        %986 = vmatpush.msra.mxu0 %v953
        %987 = vmatpush.msra.mxu0 %v952
        %988 = vmatmul.f32.gmra.mxu0 %v948
        %v989 = vpop.f32.mrf.mxu0
        %v990 = vadd.f32 %v970, %v989
        %991 = vmatmul.f32.gmra.mxu0 %v949
        %v992 = vpop.f32.mrf.mxu0
        %v993 = vadd.f32 %v970, %v992
        %994 = vdwg.mxu0
        %995 = vst [vmem:[%s770] sm:$0xff] %v990
        %996 = vst [vmem:[%s770 + $0x8] sm:$0xff] %v993
        %997 = vmatpush.msra.mxu0 %v967
        %998 = vmatpush.msra.mxu0 %v966
        %999 = vmatpush.msra.mxu0 %v965
        %1000 = vmatpush.msra.mxu0 %v964
        %1001 = vmatpush.msra.mxu0 %v963
        %1002 = vmatpush.msra.mxu0 %v962
        %1003 = vmatpush.msra.mxu0 %v961
        %1004 = vmatpush.msra.mxu0 %v960
        %1005 = vmatpush.msra.mxu0 %v959
        %1006 = vmatpush.msra.mxu0 %v958
        %1007 = vmatpush.msra.mxu0 %v957
        %1008 = vmatpush.msra.mxu0 %v956
        %1009 = vmatpush.msra.mxu0 %v955
        %1010 = vmatpush.msra.mxu0 %v954
        %1011 = vmatpush.msra.mxu0 %v953
        %1012 = vmatpush.msra.mxu0 %v952
        %1013 = vmatmul.f32.gmra.mxu0 %v950
        %v1014 = vpop.f32.mrf.mxu0
        %v1015 = vadd.f32 %v970, %v1014
        %1016 = vmatmul.f32.gmra.mxu0 %v951
        %v1017 = vpop.f32.mrf.mxu0
        %v1018 = vadd.f32 %v970, %v1017
        %1019 = vdwg.mxu0
        %1020 = vst [vmem:[%s776] sm:$0xff] %v1015
        %1021 = vst [vmem:[%s776 + $0x8] sm:$0xff] %v1018
        %v1022 = vld [vmem:[%s10] sm:$0xff]
        %v1023 = vld [vmem:[%s10 + $0x8] sm:$0xff]
        %v1024 = vld [vmem:[%s10 + $0x10] sm:$0xff]
        %v1025 = vld [vmem:[%s10 + $0x18] sm:$0xff]
        %v1026 = vld [vmem:[%s10 + $0x20] sm:$0xff]
        %v1027 = vld [vmem:[%s10 + $0x28] sm:$0xff]
        %v1028 = vld [vmem:[%s10 + $0x30] sm:$0xff]
        %v1029 = vld [vmem:[%s10 + $0x38] sm:$0xff]
        %v1030 = vld [vmem:[%s10 + $0x40] sm:$0xff]
        %v1031 = vld [vmem:[%s10 + $0x48] sm:$0xff]
        %v1032 = vld [vmem:[%s10 + $0x50] sm:$0xff]
        %v1033 = vld [vmem:[%s10 + $0x58] sm:$0xff]
        %v1034 = vld [vmem:[%s10 + $0x60] sm:$0xff]
        %v1035 = vld [vmem:[%s10 + $0x68] sm:$0xff]
        %v1036 = vld [vmem:[%s10 + $0x70] sm:$0xff]
        %v1037 = vld [vmem:[%s10 + $0x78] sm:$0xff]
        %v1038 = vld [vmem:[%s11] sm:$0xff]
        %v1039 = vld [vmem:[%s11 + $0x8] sm:$0xff]
        %v1040 = vld [vmem:[%s11 + $0x10] sm:$0xff]
        %v1041 = vld [vmem:[%s11 + $0x18] sm:$0xff]
        %v1042 = vld [vmem:[%s11 + $0x20] sm:$0xff]
        %v1043 = vld [vmem:[%s11 + $0x28] sm:$0xff]
        %v1044 = vld [vmem:[%s11 + $0x30] sm:$0xff]
        %v1045 = vld [vmem:[%s11 + $0x38] sm:$0xff]
        %v1046 = vld [vmem:[%s11 + $0x40] sm:$0xff]
        %v1047 = vld [vmem:[%s11 + $0x48] sm:$0xff]
        %v1048 = vld [vmem:[%s11 + $0x50] sm:$0xff]
        %v1049 = vld [vmem:[%s11 + $0x58] sm:$0xff]
        %v1050 = vld [vmem:[%s11 + $0x60] sm:$0xff]
        %v1051 = vld [vmem:[%s11 + $0x68] sm:$0xff]
        %v1052 = vld [vmem:[%s11 + $0x70] sm:$0xff]
        %v1053 = vld [vmem:[%s11 + $0x78] sm:$0xff]
        %1054 = vmatpush.msra.mxu0 %v1053
        %1055 = vmatpush.msra.mxu0 %v1052
        %1056 = vmatpush.msra.mxu0 %v1051
        %1057 = vmatpush.msra.mxu0 %v1050
        %1058 = vmatpush.msra.mxu0 %v1049
        %1059 = vmatpush.msra.mxu0 %v1048
        %1060 = vmatpush.msra.mxu0 %v1047
        %1061 = vmatpush.msra.mxu0 %v1046
        %1062 = vmatpush.msra.mxu0 %v1045
        %1063 = vmatpush.msra.mxu0 %v1044
        %1064 = vmatpush.msra.mxu0 %v1043
        %1065 = vmatpush.msra.mxu0 %v1042
        %1066 = vmatpush.msra.mxu0 %v1041
        %1067 = vmatpush.msra.mxu0 %v1040
        %1068 = vmatpush.msra.mxu0 %v1039
        %1069 = vmatpush.msra.mxu0 %v1038
        %1070 = vmatmul.f32.gmra.mxu0 %v950
        %v1071 = vpop.f32.mrf.mxu0
        %v1072 = vadd.f32 0.0, %v1071
        %1073 = vmatmul.f32.gmra.mxu0 %v951
        %v1074 = vpop.f32.mrf.mxu0
        %v1075 = vadd.f32 0.0, %v1074
        %1076 = vdwg.mxu0
        %1077 = vmatpush.msra.mxu0 %v1037
        %1078 = vmatpush.msra.mxu0 %v1036
        %1079 = vmatpush.msra.mxu0 %v1035
        %1080 = vmatpush.msra.mxu0 %v1034
        %1081 = vmatpush.msra.mxu0 %v1033
        %1082 = vmatpush.msra.mxu0 %v1032
        %1083 = vmatpush.msra.mxu0 %v1031
        %1084 = vmatpush.msra.mxu0 %v1030
        %1085 = vmatpush.msra.mxu0 %v1029
        %1086 = vmatpush.msra.mxu0 %v1028
        %1087 = vmatpush.msra.mxu0 %v1027
        %1088 = vmatpush.msra.mxu0 %v1026
        %1089 = vmatpush.msra.mxu0 %v1025
        %1090 = vmatpush.msra.mxu0 %v1024
        %1091 = vmatpush.msra.mxu0 %v1023
        %1092 = vmatpush.msra.mxu0 %v1022
        %1093 = vmatmul.f32.gmra.mxu0 %v948
        %v1094 = vpop.f32.mrf.mxu0
        %v1095 = vadd.f32 %v1072, %v1094
        %1096 = vmatmul.f32.gmra.mxu0 %v949
        %v1097 = vpop.f32.mrf.mxu0
        %v1098 = vadd.f32 %v1075, %v1097
        %1099 = vdwg.mxu0
        %v1100 = vld [vmem:[%s754] sm:$0xff]
        %v1101 = vld [vmem:[%s754 + $0x8] sm:$0xff]
        %v1102 = vld [vmem:[%s12] sm:$0xff]
        %v1103 = vld [vmem:[%s12 + $0x8] sm:$0xff]
        %v1104 = vld [vmem:[%s12 + $0x10] sm:$0x7f]
        %vm1105 = vcmask 187392
        %v1107 = vsel %vm1105, %v1100, 0
        %v1110 = vsel %vm1105, %v1101, 0
        %vm1112 = vcmask 1046528
        %v1114 = vsel %vm1112, %v1104, 0
        %1116 = vmatpush.msra.mxu0 0.0
        %1117 = vmatpush.msra.mxu0 0.0
        %1118 = vmatpush.msra.mxu0 0.0
        %1119 = vmatpush.msra.mxu0 0.0
        %1120 = vmatpush.msra.mxu0 0.0
        %1121 = vmatpush.msra.mxu0 0.0
        %1122 = vmatpush.msra.mxu0 0.0
        %1123 = vmatpush.msra.mxu0 0.0
        %1124 = vmatpush.msra.mxu0 0.0
        %1125 = vmatpush.msra.mxu0 0.0
        %1126 = vmatpush.msra.mxu0 0.0
        %1127 = vmatpush.msra.mxu0 0.0
        %1128 = vmatpush.msra.mxu0 0.0
        %1129 = vmatpush.msra.mxu0 %v1114
        %1130 = vmatpush.msra.mxu0 %v1103
        %1131 = vmatpush.msra.mxu0 %v1102
        %1132 = vmatmul.f32.gmra.mxu0 %v1107
        %v1133 = vpop.f32.mrf.mxu0
        %v1134 = vadd.f32 0.0, %v1133
        %1135 = vmatmul.f32.gmra.mxu0 %v1110
        %v1136 = vpop.f32.mrf.mxu0
        %v1137 = vadd.f32 0.0, %v1136
        %1138 = vdwg.mxu0
        %v1139 = vadd.f32 %v1095, %v1134
        %v1140 = vadd.f32 %v1098, %v1137
        %v1141 = vld [vmem:[%s13] sm:$0x1]
        %v1143 = vperm.slane %v1141, 0
        %v1145 = vadd.f32 %v1139, %v1143
        %v1146 = vadd.f32 %v1140, %v1143
        %1147 = vst [vmem:[%s782] sm:$0xff] %v1145
        %1148 = vst [vmem:[%s782 + $0x8] sm:$0xff] %v1146
      $region84: #{decoder_forward.1} parent=75 // pred_fallthru
        _
      %s1149 = smul.u32 2, %s33
      %p1150 = scmp.lt.s32.totalorder %s34, 1
      %s1151 = scalar_select %p1150, %s34, 1
      %p1152 = scmp.lt.s32.totalorder %s1149, 1
      %s1153 = scalar_select %p1152, %s1149, 1
      %s1154 = smul.addr %s1151, 2
      %s1155 = sadd.s32 %s1153, %s1154
      %s1156 = smul.addr %s1155, 8
      %s1157 = scalar_lea.vmem %s14, %s1156
      %s1158 = smul.u32 2, %s33
      %p1159 = scmp.lt.s32.totalorder %s1158, 1
      %s1160 = scalar_select %p1159, %s1158, 1
      %s1161 = smul.addr %s1160, 8
      %s1162 = scalar_lea.vmem %s15, %s1161
      %s1163 = smul.u32 2, %s33
      %p1164 = scmp.lt.s32.totalorder %s1163, 1
      %s1165 = scalar_select %p1164, %s1163, 1
      %s1166 = smul.addr %s1165, 8
      %s1167 = scalar_lea.vmem %s16, %s1166
      %s1168 = smul.u32 2, %s33
      %p1169 = scmp.lt.s32.totalorder %s1168, 1
      %s1170 = scalar_select %p1169, %s1168, 1
      %s1171 = smul.addr %s1170, 8
      %s1172 = scalar_lea.vmem %s17, %s1171
      // Predicated region
      $region85: #{decoder_forward.1} parent=75 // pred_check
        %p1173 = pneg %p399
      $region86: #{decoder_forward.1} parent=75 // pred_check_branch
        %1175 = sbr.rel (%p1173) target = $region88
      $region87: #{decoder_forward.1} parent=75 // pred_region
        %s1176 = smul.u32 2, %s33
      $region88: #{decoder_forward.1} parent=75 // pred_fallthru
        _
      // Predicated region
      $region89: #{decoder_forward.1} parent=75 // pred_check
        %p1177 = pneg %p425
      $region90: #{decoder_forward.1} parent=75 // pred_check_branch
        %1179 = sbr.rel (%p1177) target = $region92
      $region91: #{decoder_forward.1} parent=75 // pred_region
        %s1180 = smul.u32 2, %s33
      $region92: #{decoder_forward.1} parent=75 // pred_fallthru
        _
      // Predicated region
      $region93: #{decoder_forward.1} parent=75 // pred_check
        %p1181 = pneg %p451
      $region94: #{decoder_forward.1} parent=75 // pred_check_branch
        %1183 = sbr.rel (%p1181) target = $region96
      $region95: #{decoder_forward.1} parent=75 // pred_region
        %s1184 = smul.u32 2, %s33
      $region96: #{decoder_forward.1} parent=75 // pred_fallthru
        _
      // Predicated region
      $region97: #{decoder_forward.1} parent=75 // pred_check
        %p1185 = pneg %p477
      $region98: #{decoder_forward.1} parent=75 // pred_check_branch
        %1187 = sbr.rel (%p1185) target = $region100
      $region99: #{decoder_forward.1} parent=75 // pred_region
        %s1188 = smul.u32 2, %s33
      $region100: #{decoder_forward.1} parent=75 // pred_fallthru
        _
      // Predicated region
      $region101: #{decoder_forward.1} parent=75 // pred_check
        %p1189 = pneg %p425
      $region102: #{decoder_forward.1} parent=75 // pred_check_branch
        %1191 = sbr.rel (%p1189) target = $region104
      $region103: #{decoder_forward.1} parent=75 // pred_region
        %s1192 = smul.u32 2, %s33
        %p1193 = scmp.lt.s32.totalorder %s1192, 1
        %s1194 = scalar_select %p1193, %s1192, 1
        %s1195 = smul.addr %s1194, 8
        %s1196 = scalar_lea.vmem %s15, %s1195
      $region104: #{decoder_forward.1} parent=75 // pred_fallthru
        _
      // Predicated region
      $region105: #{decoder_forward.1} parent=75 // pred_check
        %p1197 = pneg %p451
      $region106: #{decoder_forward.1} parent=75 // pred_check_branch
        %1199 = sbr.rel (%p1197) target = $region108
      $region107: #{decoder_forward.1} parent=75 // pred_region
        %s1200 = smul.u32 2, %s33
        %p1201 = scmp.lt.s32.totalorder %s1200, 1
        %s1202 = scalar_select %p1201, %s1200, 1
        %s1203 = smul.addr %s1202, 8
        %s1204 = scalar_lea.vmem %s16, %s1203
      $region108: #{decoder_forward.1} parent=75 // pred_fallthru
        _
      // Predicated region
      $region109: #{decoder_forward.1} parent=75 // pred_check
        %p1205 = pneg %p477
      $region110: #{decoder_forward.1} parent=75 // pred_check_branch
        %1207 = sbr.rel (%p1205) target = $region112
      $region111: #{decoder_forward.1} parent=75 // pred_region
        %s1208 = smul.u32 2, %s33
        %p1209 = scmp.lt.s32.totalorder %s1208, 1
        %s1210 = scalar_select %p1209, %s1208, 1
        %s1211 = smul.addr %s1210, 8
        %s1212 = scalar_lea.vmem %s17, %s1211
      $region112: #{decoder_forward.1} parent=75 // pred_fallthru
        _
    $region76: #{decoder_forward.1} parent=5 // pred_fallthru
      _
    %p1213 = scmp.le.s32.totalorder 2, %s24
    // Predicated region
    $region113: #{decoder_forward.1} parent=5 // pred_check
      %p1214 = pneg %p1213
    $region114: #{decoder_forward.1} parent=5 // pred_check_branch
      %1216 = sbr.rel (%p1214) target = $region116
    $region115: #{decoder_forward.1} parent=5 // pred_region
      %s1217 = ssub.s32 %s24, 2
      // Predicated region
      $region117: #{decoder_forward.1} parent=115 // pred_check
        %p1218 = pneg %p405
      $region118: #{decoder_forward.1} parent=115 // pred_check_branch
        %1220 = sbr.rel (%p1218) target = $region120
      $region119: #{decoder_forward.1} parent=115 // pred_region
        %s1221 = smul.u32 2, %s35
        %p1222 = scmp.lt.s32.totalorder %s36, 1
        %s1223 = scalar_select %p1222, %s36, 1
        %p1224 = scmp.lt.s32.totalorder %s1221, 1
        %s1225 = scalar_select %p1224, %s1221, 1
        %s1226 = smul.addr %s1223, 2
        %s1227 = sadd.s32 %s1225, %s1226
        %s1228 = smul.addr %s1227, 8
        %s1229 = scalar_lea.vmem %s14, %s1228
      $region120: #{decoder_forward.1} parent=115 // pred_fallthru
        _
    $region116: #{decoder_forward.1} parent=5 // pred_fallthru
      _
  $region6: #{decoder_forward.1} parent=0 // loop_footer
    %s28 = sadd.s32 1, %s24
  $region7: #{decoder_forward.1} parent=0 // loop_footer_branch
    %23 = sbr.rel target = $region3
  $region8: #{decoder_forward.1} parent=0 // loop_exit
    _

</llo_original>
